<compile_context>
chip_gen: v5e
topology: v5e:2x2
jax: 0.10.0
libtpu: 0.0.40
codegen_flags: <defaults>
</compile_context>

<pallas_src>
import jax
import jax.numpy as jnp
from jax.experimental import pallas as pl
from jax.experimental.pallas import tpu as pltpu

IMAGE_FEATURE_DIM = 512
TEXT_FEATURE_DIM = 768
FUSION_OUTPUT_SIZE = 512
NUM_CLASSES = 2
NUM_CLASSES_PAD = 128        # lane-dense classifier width; wrapper slices [:, :2]


def _round_up(x, m):
    return (x + m - 1) // m * m


# ---------------------------------------------------------------------------
# Pallas kernel: fused  cat + Linear + ReLU + (Dropout=identity) + Linear
# ---------------------------------------------------------------------------
def fusion_kernel(img_ref, txt_ref, w1i_ref, w1t_ref, b1_ref, w2_ref, b2_ref,
                  out_ref):
    # concat(img, txt) @ W1 == img @ W1_img + txt @ W1_txt  (split-weight trick).
    # bf16 MXU operands, f32 accumulation; elementwise (bias, ReLU) in f32.
    acc = jnp.dot(img_ref[...], w1i_ref[...], preferred_element_type=jnp.float32)
    acc = acc + jnp.dot(txt_ref[...], w1t_ref[...],
                        preferred_element_type=jnp.float32)
    h = jnp.maximum(acc + b1_ref[...], 0.0)                       # Linear1 + ReLU
    # Dropout(p=0.5): identity in inference mode.
    # TODO(synk): training-mode dropout (random mask + 1/(1-p) scale) not implemented.
    logits = jnp.dot(h.astype(w2_ref.dtype), w2_ref[...],
                     preferred_element_type=jnp.float32) + b2_ref[...]
    out_ref[...] = logits.astype(out_ref.dtype)                   # lane-dense store


def fusion_forward(img_feat, txt_feat, w1, b1, w2, b2, *, row_tile=256):
    """img_feat: (B, 512), txt_feat: (B, 768), w1: (1280, 512), b1: (512,),
    w2: (512, 2), b2: (2,)  ->  (B, 2) float32 logits."""
    B = img_feat.shape[0]
    # Row tile: multiple of 16 (bf16 sublane packing), capped at 256 so the
    # double-buffered activation tiles stay well inside v7x's 64 MiB VMEM.
    TM = min(row_tile, _round_up(B, 16))
    Bp = _round_up(B, TM)

    def pad_rows(x):
        return jnp.pad(x, ((0, Bp - B), (0, 0))) if Bp != B else x

    # bf16 matmul operands (halves W1 DMA bytes, doubles MXU throughput).
    img_p = pad_rows(img_feat).astype(jnp.bfloat16)                 # (Bp, 512)
    txt_p = pad_rows(txt_feat).astype(jnp.bfloat16)                 # (Bp, 768)
    w1_img = w1[:IMAGE_FEATURE_DIM].astype(jnp.bfloat16)            # (512, 512)
    w1_txt = w1[IMAGE_FEATURE_DIM:].astype(jnp.bfloat16)            # (768, 512)
    b1_2d = b1.reshape(1, FUSION_OUTPUT_SIZE).astype(jnp.float32)   # (1, 512)
    # Zero-pad the classifier to a lane-dense N=128.
    w2_pad = jnp.zeros((FUSION_OUTPUT_SIZE, NUM_CLASSES_PAD), jnp.bfloat16)
    w2_pad = w2_pad.at[:, :NUM_CLASSES].set(w2.astype(jnp.bfloat16))
    b2_pad = jnp.zeros((1, NUM_CLASSES_PAD), jnp.float32)
    b2_pad = b2_pad.at[:, :NUM_CLASSES].set(b2.astype(jnp.float32))

    row_spec = lambda ncols: pl.BlockSpec((TM, ncols), lambda i: (i, 0))
    fix_spec = lambda shape: pl.BlockSpec(shape, lambda i: (0, 0))  # VMEM-resident

    out_padded = pl.pallas_call(
        fusion_kernel,
        out_shape=jax.ShapeDtypeStruct((Bp, NUM_CLASSES_PAD), jnp.float32),
        grid_spec=pltpu.PrefetchScalarGridSpec(
            num_scalar_prefetch=0,
            grid=(Bp // TM,),
            in_specs=[
                row_spec(IMAGE_FEATURE_DIM),
                row_spec(TEXT_FEATURE_DIM),
                fix_spec((IMAGE_FEATURE_DIM, FUSION_OUTPUT_SIZE)),
                fix_spec((TEXT_FEATURE_DIM, FUSION_OUTPUT_SIZE)),
                fix_spec((1, FUSION_OUTPUT_SIZE)),
                fix_spec((FUSION_OUTPUT_SIZE, NUM_CLASSES_PAD)),
                fix_spec((1, NUM_CLASSES_PAD)),
            ],
            out_specs=row_spec(NUM_CLASSES_PAD),
        ),
        compiler_params=pltpu.CompilerParams(
            dimension_semantics=("parallel",),
            vmem_limit_bytes=32 * 1024 * 1024,
        ),
    )(img_p, txt_p, w1_img, w1_txt, b1_2d, w2_pad, b2_pad)

    return out_padded[:B, :NUM_CLASSES]


# ---------------------------------------------------------------------------
# Stand-in backbones (plain-JAX glue; not part of the module's own compute)
# ---------------------------------------------------------------------------
def image_backbone(image, w_img):
    """image: (B, C, H, W) NCHW -> global average pool -> linear -> (B, 512)."""
    pooled = jnp.mean(image, axis=(2, 3))                  # (B, C)
    return pooled @ w_img                                   # (B, 512)


def text_backbone(input_ids, attention_mask, embed_table, w_txt):
    """input_ids/attention_mask: (B, S) -> masked mean of embeddings -> linear -> (B, 768)."""
    emb = embed_table[input_ids]                            # (B, S, E)
    mask = attention_mask[..., None].astype(jnp.float32)    # (B, S, 1)
    pooled = (emb * mask).sum(axis=1) / jnp.maximum(mask.sum(axis=1), 1.0)
    return pooled @ w_txt                                    # (B, 768)


# ---------------------------------------------------------------------------
def early_fusion_model(image, input_ids, attention_mask, params):
    img_feat = image_backbone(image, params["w_img"])
    txt_feat = text_backbone(input_ids, attention_mask,
                             params["embed"], params["w_txt"])
    return fusion_forward(img_feat, txt_feat,
                          params["w1"], params["b1"],
                          params["w2"], params["b2"])


def reference(image, input_ids, attention_mask, params):
    img_feat = image_backbone(image, params["w_img"])
    txt_feat = text_backbone(input_ids, attention_mask,
                             params["embed"], params["w_txt"])
    combined = jnp.concatenate([img_feat, txt_feat], axis=1)
    h = jnp.maximum(combined @ params["w1"] + params["b1"], 0.0)
    return h @ params["w2"] + params["b2"]


if __name__ == "__main__":
    key = jax.random.PRNGKey(0)
    ks = jax.random.split(key, 10)

    B, C, H, W = 2, 4, 16, 16
    S, VOCAB, E = 8, 100, 32

    # Deterministic parameter init (synthetic; no checkpoint load).
    params = {
        "w_img": jax.random.normal(ks[0], (C, IMAGE_FEATURE_DIM), jnp.float32) * 0.05,
        "embed": jax.random.normal(ks[1], (VOCAB, E), jnp.float32) * 0.05,
        "w_txt": jax.random.normal(ks[2], (E, TEXT_FEATURE_DIM), jnp.float32) * 0.05,
        "w1": jax.random.normal(ks[3], (IMAGE_FEATURE_DIM + TEXT_FEATURE_DIM,
                                        FUSION_OUTPUT_SIZE), jnp.float32) * 0.02,
        "b1": jax.random.normal(ks[4], (FUSION_OUTPUT_SIZE,), jnp.float32) * 0.01,
        "w2": jax.random.normal(ks[5], (FUSION_OUTPUT_SIZE, NUM_CLASSES), jnp.float32) * 0.02,
        "b2": jax.random.normal(ks[6], (NUM_CLASSES,), jnp.float32) * 0.01,
    }

    image = jax.random.normal(ks[7], (B, C, H, W), jnp.float32)
    input_ids = jax.random.randint(ks[8], (B, S), 0, VOCAB)
    attention_mask = (jax.random.uniform(ks[9], (B, S)) > 0.2).astype(jnp.int32)

    out = early_fusion_model(image, input_ids, attention_mask, params)
    out = jax.block_until_ready(out)

    ref = reference(image, input_ids, attention_mask, params)
    assert out.shape == (B, NUM_CLASSES)
    # bf16 matmul operands (f32 accumulation) -> looser tolerance vs f32 reference.
    assert jnp.allclose(out, ref, atol=1e-3, rtol=3e-2), (out, ref)
    print("KERNEL_OK")
</pallas_src>

<mosaic_0001>
module attributes {stable_mosaic.version = 11 : i64} {
  func.func @fusion_kernel(%arg0: i32, %arg1: memref<16x512xbf16, #tpu.memory_space<vmem>>, %arg2: memref<16x768xbf16, #tpu.memory_space<vmem>>, %arg3: memref<512x512xbf16, #tpu.memory_space<vmem>>, %arg4: memref<768x512xbf16, #tpu.memory_space<vmem>>, %arg5: memref<1x512xf32, #tpu.memory_space<vmem>>, %arg6: memref<512x128xbf16, #tpu.memory_space<vmem>>, %arg7: memref<1x128xf32, #tpu.memory_space<vmem>>, %arg8: memref<16x128xf32, #tpu.memory_space<vmem>>) attributes {dimension_semantics = [#tpu.dimension_semantics<parallel>], iteration_bounds = array<i64: 1>, scalar_prefetch = 0 : i64, scratch_operands = 0 : i64, tpu.core_type = #tpu.core_type<tc>, window_params = [{transform_indices = @transform_0, window_bounds = array<i64: 16, 512>}, {transform_indices = @transform_1, window_bounds = array<i64: 16, 768>}, {pipeline_mode = #tpu.pipeline_mode<synchronous>, transform_indices = @transform_2, window_bounds = array<i64: 512, 512>}, {pipeline_mode = #tpu.pipeline_mode<synchronous>, transform_indices = @transform_3, window_bounds = array<i64: 768, 512>}, {pipeline_mode = #tpu.pipeline_mode<synchronous>, transform_indices = @transform_4, window_bounds = array<i64: 1, 512>}, {pipeline_mode = #tpu.pipeline_mode<synchronous>, transform_indices = @transform_5, window_bounds = array<i64: 512, 128>}, {pipeline_mode = #tpu.pipeline_mode<synchronous>, transform_indices = @transform_6, window_bounds = array<i64: 1, 128>}, {transform_indices = @transform_7, window_bounds = array<i64: 16, 128>}]} {
    %c0 = arith.constant 0 : index
    %c0_0 = arith.constant 0 : index
    %0 = vector.load %arg1[%c0, %c0_0] : memref<16x512xbf16, #tpu.memory_space<vmem>>, vector<16x512xbf16>
    %c0_1 = arith.constant 0 : index
    %c0_2 = arith.constant 0 : index
    %1 = vector.load %arg3[%c0_1, %c0_2] : memref<512x512xbf16, #tpu.memory_space<vmem>>, vector<512x512xbf16>
    %cst = arith.constant dense<0.000000e+00> : vector<16x512xf32>
    %2 = tpu.matmul %0, %1, %cst {dimension_numbers = #tpu.dot_dimension_numbers<[1], [0], [0], [1], [0, 0, 1, 1], [], []>} : vector<16x512xbf16>, vector<512x512xbf16>, vector<16x512xf32> -> vector<16x512xf32>
    %c0_3 = arith.constant 0 : index
    %c0_4 = arith.constant 0 : index
    %3 = vector.load %arg2[%c0_3, %c0_4] : memref<16x768xbf16, #tpu.memory_space<vmem>>, vector<16x768xbf16>
    %c0_5 = arith.constant 0 : index
    %c0_6 = arith.constant 0 : index
    %4 = vector.load %arg4[%c0_5, %c0_6] : memref<768x512xbf16, #tpu.memory_space<vmem>>, vector<768x512xbf16>
    %cst_7 = arith.constant dense<0.000000e+00> : vector<16x512xf32>
    %5 = tpu.matmul %3, %4, %cst_7 {dimension_numbers = #tpu.dot_dimension_numbers<[1], [0], [0], [1], [0, 0, 1, 1], [], []>} : vector<16x768xbf16>, vector<768x512xbf16>, vector<16x512xf32> -> vector<16x512xf32>
    %6 = arith.addf %2, %5 : vector<16x512xf32>
    %c0_8 = arith.constant 0 : index
    %c0_9 = arith.constant 0 : index
    %7 = vector.load %arg5[%c0_8, %c0_9] : memref<1x512xf32, #tpu.memory_space<vmem>>, vector<1x512xf32>
    %8 = vector.broadcast %7 : vector<1x512xf32> to vector<16x512xf32>
    %9 = arith.addf %6, %8 : vector<16x512xf32>
    %cst_10 = arith.constant 0.000000e+00 : f32
    %10 = vector.broadcast %cst_10 : f32 to vector<16x512xf32>
    %11 = arith.maximumf %9, %10 : vector<16x512xf32>
    %12 = arith.truncf %11 : vector<16x512xf32> to vector<16x512xbf16>
    %c0_11 = arith.constant 0 : index
    %c0_12 = arith.constant 0 : index
    %13 = vector.load %arg6[%c0_11, %c0_12] : memref<512x128xbf16, #tpu.memory_space<vmem>>, vector<512x128xbf16>
    %cst_13 = arith.constant dense<0.000000e+00> : vector<16x128xf32>
    %14 = tpu.matmul %12, %13, %cst_13 {dimension_numbers = #tpu.dot_dimension_numbers<[1], [0], [0], [1], [0, 0, 1, 1], [], []>} : vector<16x512xbf16>, vector<512x128xbf16>, vector<16x128xf32> -> vector<16x128xf32>
    %c0_14 = arith.constant 0 : index
    %c0_15 = arith.constant 0 : index
    %15 = vector.load %arg7[%c0_14, %c0_15] : memref<1x128xf32, #tpu.memory_space<vmem>>, vector<1x128xf32>
    %16 = vector.broadcast %15 : vector<1x128xf32> to vector<16x128xf32>
    %17 = arith.addf %14, %16 : vector<16x128xf32>
    %c0_16 = arith.constant 0 : index
    %c0_17 = arith.constant 0 : index
    %18 = vector.load %arg8[%c0_16, %c0_17] : memref<16x128xf32, #tpu.memory_space<vmem>>, vector<16x128xf32>
    tpu.vector_store %arg8[%c0_16, %c0_17], %17 {strides = array<i32>} : memref<16x128xf32, #tpu.memory_space<vmem>>, vector<16x128xf32>,
    return
  }
  func.func @transform_0(%arg0: i32) -> (i32, i32) {
    %c0_i32 = arith.constant 0 : i32
    %c0_i32_0 = arith.constant 0 : i32
    return %arg0, %c0_i32 : i32, i32
  }
  func.func @transform_1(%arg0: i32) -> (i32, i32) {
    %c0_i32 = arith.constant 0 : i32
    %c0_i32_0 = arith.constant 0 : i32
    return %arg0, %c0_i32 : i32, i32
  }
  func.func @transform_2(%arg0: i32) -> (i32, i32) {
    %c0_i32 = arith.constant 0 : i32
    %c0_i32_0 = arith.constant 0 : i32
    %c0_i32_1 = arith.constant 0 : i32
    return %c0_i32, %c0_i32_0 : i32, i32
  }
  func.func @transform_3(%arg0: i32) -> (i32, i32) {
    %c0_i32 = arith.constant 0 : i32
    %c0_i32_0 = arith.constant 0 : i32
    %c0_i32_1 = arith.constant 0 : i32
    return %c0_i32, %c0_i32_0 : i32, i32
  }
  func.func @transform_4(%arg0: i32) -> (i32, i32) {
    %c0_i32 = arith.constant 0 : i32
    %c0_i32_0 = arith.constant 0 : i32
    %c0_i32_1 = arith.constant 0 : i32
    return %c0_i32, %c0_i32_0 : i32, i32
  }
  func.func @transform_5(%arg0: i32) -> (i32, i32) {
    %c0_i32 = arith.constant 0 : i32
    %c0_i32_0 = arith.constant 0 : i32
    %c0_i32_1 = arith.constant 0 : i32
    return %c0_i32, %c0_i32_0 : i32, i32
  }
  func.func @transform_6(%arg0: i32) -> (i32, i32) {
    %c0_i32 = arith.constant 0 : i32
    %c0_i32_0 = arith.constant 0 : i32
    %c0_i32_1 = arith.constant 0 : i32
    return %c0_i32, %c0_i32_0 : i32, i32
  }
  func.func @transform_7(%arg0: i32) -> (i32, i32) {
    %c0_i32 = arith.constant 0 : i32
    %c0_i32_0 = arith.constant 0 : i32
    return %arg0, %c0_i32 : i32, i32
  }
}

</mosaic_0001>

<llo_original>
// kernel: tpu_custom_call.1
$region0: #{tpu_custom_call.1}
  #allocation0 [shape = 'u32[]', space=smem, size = 0x4, offset = 0x4, fixed_abs, tag = 'smem constant byte address 0x4 - core index']
  #allocation1 [shape = 'u32[72,128]{1,0:T(1,128)}', space=vmem, size = 0x9000, scoped, tag = 'internal scratch']
  %s0 = inlined_call_operand.hbm [shape: bf16[16,512], index: 0, kind: input, shape index: {}]
  %s1 = inlined_call_operand.hbm [shape: bf16[16,768], index: 1, kind: input, shape index: {}]
  %s2 = inlined_call_operand.hbm [shape: bf16[512,512], index: 2, kind: input, shape index: {}]
  %s3 = inlined_call_operand.hbm [shape: bf16[768,512], index: 3, kind: input, shape index: {}]
  %s4 = inlined_call_operand.hbm [shape: f32[1,512], index: 4, kind: input, shape index: {}]
  %s5 = inlined_call_operand.hbm [shape: bf16[512,128], index: 5, kind: input, shape index: {}]
  %s6 = inlined_call_operand.vmem [shape: f32[1,128], index: 6, kind: input, shape index: {}]
  %s7 = inlined_call_operand.hbm [shape: f32[16,128], index: 7, kind: output, shape index: {}]
  %s8 = sld [smem:[#allocation0]]
  $region62: #{tpu_custom_call.1} parent=0
    _
  %s10 = ssub.s32 1, %s8
  %s11 = scalar_select 0, %s10, %s8
  $region1: #{tpu_custom_call.1} parent=0
    #allocation2 [shape = 'u8[16384]{0}', space=vmem, size = 0x4000, scoped, tag = 'input window, operand 0, single buffered']
    #allocation3 [shape = 's32[1]{0}', space=sflag, size = 0x4, scoped, tag = 'scoped memory for tpu_custom_call.1']
    #allocation4 [shape = 's32[1]{0}', space=sflag, size = 0x4, scoped, tag = 'scoped memory for tpu_custom_call.1']
    #allocation5 [shape = 'u8[24576]{0}', space=vmem, size = 0x6000, scoped, tag = 'input window, operand 1, single buffered']
    #allocation6 [shape = 's32[1]{0}', space=sflag, size = 0x4, scoped, tag = 'scoped memory for tpu_custom_call.1']
    #allocation7 [shape = 'u8[524288]{0}', space=vmem, size = 0x80000, scoped, tag = 'input window, operand 2, single buffered']
    #allocation8 [shape = 'u8[786432]{0}', space=vmem, size = 0xc0000, scoped, tag = 'input window, operand 3, single buffered']
    #allocation9 [shape = 's32[1]{0}', space=sflag, size = 0x4, scoped, tag = 'scoped memory for tpu_custom_call.1']
    #allocation10 [shape = 'u8[2048]{0}', space=vmem, size = 0x800, scoped, tag = 'input window, operand 4, single buffered']
    #allocation11 [shape = 'u8[131072]{0}', space=vmem, size = 0x20000, scoped, tag = 'input window, operand 5, single buffered']
    #allocation12 [shape = 's32[1]{0}', space=sflag, size = 0x4, scoped, tag = 'scoped memory for tpu_custom_call.1']
    #allocation13 [shape = 'u8[8192]{0}', space=vmem, size = 0x2000, scoped, tag = 'output window, operand 0, single buffered']
    %12 = vsyncpa [#allocation3], 0
    %13 = vsyncpa [#allocation6], 0
    %14 = vsyncpa [#allocation9], 0
    %15 = vsyncpa [#allocation12], 0
    %16 = vsyncpa [#allocation4], 0
    // Predicated region
    $region2: #{tpu_custom_call.1} parent=1 // pred_check
      _
    $region3: #{tpu_custom_call.1} parent=1 // pred_check_branch
      %18 = sbr.rel (0) target = $region5
    $region4: #{tpu_custom_call.1} parent=1 // pred_region
      %20 = vsyncadd [#allocation3], 0
      %s21 = sshll.u32 %s0, 4
      %s22 = int_to_ptr.hbm [resolvable:$true] %s21
      %s23 = sshll.u32 [#allocation2], 4
      %s24 = int_to_ptr.vmem [resolvable:$true] %s23
      %29 = dma.hbm_to_vmem [thread:$0]  %s22, 512, %s24, [#allocation3], 256, 256, 16
    $region5: #{tpu_custom_call.1} parent=1 // pred_fallthru
      _
    // Predicated region
    $region6: #{tpu_custom_call.1} parent=1 // pred_check
      _
    $region7: #{tpu_custom_call.1} parent=1 // pred_check_branch
      %31 = sbr.rel (0) target = $region9
    $region8: #{tpu_custom_call.1} parent=1 // pred_region
      %33 = vsyncadd [#allocation6], 0
      %s34 = sshll.u32 %s1, 4
      %s35 = int_to_ptr.hbm [resolvable:$true] %s34
      %s36 = sshll.u32 [#allocation5], 4
      %s37 = int_to_ptr.vmem [resolvable:$true] %s36
      %42 = dma.hbm_to_vmem [thread:$0]  %s35, 768, %s37, [#allocation6], 384, 384, 24
    $region9: #{tpu_custom_call.1} parent=1 // pred_fallthru
      _
    // Predicated region
    $region10: #{tpu_custom_call.1} parent=1 // pred_check
      _
    $region11: #{tpu_custom_call.1} parent=1 // pred_check_branch
      %44 = sbr.rel (0) target = $region13
    $region12: #{tpu_custom_call.1} parent=1 // pred_region
      %46 = vsyncadd [#allocation6], 0
      %s47 = sshll.u32 %s2, 4
      %s48 = int_to_ptr.hbm [resolvable:$true] %s47
      %s49 = sshll.u32 [#allocation7], 4
      %s50 = int_to_ptr.vmem [resolvable:$true] %s49
      %55 = dma.hbm_to_vmem [thread:$0]  %s48, 16384, %s50, [#allocation6], 256, 256, 16
    $region13: #{tpu_custom_call.1} parent=1 // pred_fallthru
      _
    // Predicated region
    $region14: #{tpu_custom_call.1} parent=1 // pred_check
      _
    $region15: #{tpu_custom_call.1} parent=1 // pred_check_branch
      %57 = sbr.rel (0) target = $region17
    $region16: #{tpu_custom_call.1} parent=1 // pred_region
      %59 = vsyncadd [#allocation9], 0
      %s60 = sshll.u32 %s3, 4
      %s61 = int_to_ptr.hbm [resolvable:$true] %s60
      %s62 = sshll.u32 [#allocation8], 4
      %s63 = int_to_ptr.vmem [resolvable:$true] %s62
      %68 = dma.hbm_to_vmem [thread:$0]  %s61, 24576, %s63, [#allocation9], 256, 256, 16
    $region17: #{tpu_custom_call.1} parent=1 // pred_fallthru
      _
    // Predicated region
    $region18: #{tpu_custom_call.1} parent=1 // pred_check
      _
    $region19: #{tpu_custom_call.1} parent=1 // pred_check_branch
      %70 = sbr.rel (0) target = $region21
    $region20: #{tpu_custom_call.1} parent=1 // pred_region
      %72 = vsyncadd [#allocation9], 0
      %s74 = sshll.u32 %s4, 4
      %s75 = int_to_ptr.hbm [resolvable:$true] %s74
      %s76 = sshll.u32 [#allocation10], 4
      %s77 = int_to_ptr.vmem [resolvable:$true] %s76
      %79 = dma.hbm_to_vmem [thread:$0]  %s75, 64, %s77, [#allocation9]
    $region21: #{tpu_custom_call.1} parent=1 // pred_fallthru
      _
    // Predicated region
    $region22: #{tpu_custom_call.1} parent=1 // pred_check
      _
    $region23: #{tpu_custom_call.1} parent=1 // pred_check_branch
      %81 = sbr.rel (0) target = $region25
    $region24: #{tpu_custom_call.1} parent=1 // pred_region
      %83 = vsyncadd [#allocation12], 0
      %s84 = sshll.u32 %s5, 4
      %s85 = int_to_ptr.hbm [resolvable:$true] %s84
      %s86 = sshll.u32 [#allocation11], 4
      %s87 = int_to_ptr.vmem [resolvable:$true] %s86
      %92 = dma.hbm_to_vmem [thread:$0]  %s85, 4096, %s87, [#allocation12], 64, 64, 4
    $region25: #{tpu_custom_call.1} parent=1 // pred_fallthru
      _
    // Predicated region
    $region26: #{tpu_custom_call.1} parent=1 // pred_check
      _
    $region27: #{tpu_custom_call.1} parent=1 // pred_check_branch
      %94 = sbr.rel (0) target = $region29
    $region28: #{tpu_custom_call.1} parent=1 // pred_region
      _
    $region29: #{tpu_custom_call.1} parent=1 // pred_fallthru
      _
    // Predicated region
    $region30: #{tpu_custom_call.1} parent=1 // pred_check
      _
    $region31: #{tpu_custom_call.1} parent=1 // pred_check_branch
      %96 = sbr.rel (0) target = $region33
    $region32: #{tpu_custom_call.1} parent=1 // pred_region
      %98 = dma.done [#allocation3], 512
    $region33: #{tpu_custom_call.1} parent=1 // pred_fallthru
      _
    // Predicated region
    $region34: #{tpu_custom_call.1} parent=1 // pred_check
      _
    $region35: #{tpu_custom_call.1} parent=1 // pred_check_branch
      %100 = sbr.rel (0) target = $region37
    $region36: #{tpu_custom_call.1} parent=1 // pred_region
      %102 = dma.done [#allocation6], 768
    $region37: #{tpu_custom_call.1} parent=1 // pred_fallthru
      _
    // Predicated region
    $region38: #{tpu_custom_call.1} parent=1 // pred_check
      _
    $region39: #{tpu_custom_call.1} parent=1 // pred_check_branch
      %104 = sbr.rel (0) target = $region41
    $region40: #{tpu_custom_call.1} parent=1 // pred_region
      %106 = dma.done [#allocation6], 16384
    $region41: #{tpu_custom_call.1} parent=1 // pred_fallthru
      _
    // Predicated region
    $region42: #{tpu_custom_call.1} parent=1 // pred_check
      _
    $region43: #{tpu_custom_call.1} parent=1 // pred_check_branch
      %108 = sbr.rel (0) target = $region45
    $region44: #{tpu_custom_call.1} parent=1 // pred_region
      %110 = dma.done [#allocation9], 24576
    $region45: #{tpu_custom_call.1} parent=1 // pred_fallthru
      _
    // Predicated region
    $region46: #{tpu_custom_call.1} parent=1 // pred_check
      _
    $region47: #{tpu_custom_call.1} parent=1 // pred_check_branch
      %112 = sbr.rel (0) target = $region49
    $region48: #{tpu_custom_call.1} parent=1 // pred_region
      %114 = dma.done [#allocation9], 64
    $region49: #{tpu_custom_call.1} parent=1 // pred_fallthru
      _
    // Predicated region
    $region50: #{tpu_custom_call.1} parent=1 // pred_check
      _
    $region51: #{tpu_custom_call.1} parent=1 // pred_check_branch
      %116 = sbr.rel (0) target = $region53
    $region52: #{tpu_custom_call.1} parent=1 // pred_region
      %118 = dma.done [#allocation12], 4096
    $region53: #{tpu_custom_call.1} parent=1 // pred_fallthru
      _
    %v119 = vld [vmem:[#allocation2] sm:$0xff]
    %v120 = vld [vmem:[#allocation2 + $0x8] sm:$0xff]
    %v121 = vld [vmem:[#allocation2 + $0x10] sm:$0xff]
    %v122 = vld [vmem:[#allocation2 + $0x18] sm:$0xff]
    %v123 = vld [vmem:[#allocation7] sm:$0xff]
    %v124 = vld [vmem:[#allocation7 + $0x8] sm:$0xff]
    %v125 = vld [vmem:[#allocation7 + $0x10] sm:$0xff]
    %v126 = vld [vmem:[#allocation7 + $0x18] sm:$0xff]
    %v127 = vld [vmem:[#allocation7 + $0x20] sm:$0xff]
    %v128 = vld [vmem:[#allocation7 + $0x28] sm:$0xff]
    %v129 = vld [vmem:[#allocation7 + $0x30] sm:$0xff]
    %v130 = vld [vmem:[#allocation7 + $0x38] sm:$0xff]
    %v131 = vld [vmem:[#allocation7 + $0x40] sm:$0xff]
    %v132 = vld [vmem:[#allocation7 + $0x48] sm:$0xff]
    %v133 = vld [vmem:[#allocation7 + $0x50] sm:$0xff]
    %v134 = vld [vmem:[#allocation7 + $0x58] sm:$0xff]
    %v135 = vld [vmem:[#allocation7 + $0x60] sm:$0xff]
    %v136 = vld [vmem:[#allocation7 + $0x68] sm:$0xff]
    %v137 = vld [vmem:[#allocation7 + $0x70] sm:$0xff]
    %v138 = vld [vmem:[#allocation7 + $0x78] sm:$0xff]
    %v139 = vld [vmem:[#allocation7 + $0x80] sm:$0xff]
    %v140 = vld [vmem:[#allocation7 + $0x88] sm:$0xff]
    %v141 = vld [vmem:[#allocation7 + $0x90] sm:$0xff]
    %v142 = vld [vmem:[#allocation7 + $0x98] sm:$0xff]
    %v143 = vld [vmem:[#allocation7 + $0xa0] sm:$0xff]
    %v144 = vld [vmem:[#allocation7 + $0xa8] sm:$0xff]
    %v145 = vld [vmem:[#allocation7 + $0xb0] sm:$0xff]
    %v146 = vld [vmem:[#allocation7 + $0xb8] sm:$0xff]
    %v147 = vld [vmem:[#allocation7 + $0xc0] sm:$0xff]
    %v148 = vld [vmem:[#allocation7 + $0xc8] sm:$0xff]
    %v149 = vld [vmem:[#allocation7 + $0xd0] sm:$0xff]
    %v150 = vld [vmem:[#allocation7 + $0xd8] sm:$0xff]
    %v151 = vld [vmem:[#allocation7 + $0xe0] sm:$0xff]
    %v152 = vld [vmem:[#allocation7 + $0xe8] sm:$0xff]
    %v153 = vld [vmem:[#allocation7 + $0xf0] sm:$0xff]
    %v154 = vld [vmem:[#allocation7 + $0xf8] sm:$0xff]
    %v155 = vld [vmem:[#allocation7 + $0x100] sm:$0xff]
    %v156 = vld [vmem:[#allocation7 + $0x108] sm:$0xff]
    %v157 = vld [vmem:[#allocation7 + $0x110] sm:$0xff]
    %v158 = vld [vmem:[#allocation7 + $0x118] sm:$0xff]
    %v159 = vld [vmem:[#allocation7 + $0x120] sm:$0xff]
    %v160 = vld [vmem:[#allocation7 + $0x128] sm:$0xff]
    %v161 = vld [vmem:[#allocation7 + $0x130] sm:$0xff]
    %v162 = vld [vmem:[#allocation7 + $0x138] sm:$0xff]
    %v163 = vld [vmem:[#allocation7 + $0x140] sm:$0xff]
    %v164 = vld [vmem:[#allocation7 + $0x148] sm:$0xff]
    %v165 = vld [vmem:[#allocation7 + $0x150] sm:$0xff]
    %v166 = vld [vmem:[#allocation7 + $0x158] sm:$0xff]
    %v167 = vld [vmem:[#allocation7 + $0x160] sm:$0xff]
    %v168 = vld [vmem:[#allocation7 + $0x168] sm:$0xff]
    %v169 = vld [vmem:[#allocation7 + $0x170] sm:$0xff]
    %v170 = vld [vmem:[#allocation7 + $0x178] sm:$0xff]
    %v171 = vld [vmem:[#allocation7 + $0x180] sm:$0xff]
    %v172 = vld [vmem:[#allocation7 + $0x188] sm:$0xff]
    %v173 = vld [vmem:[#allocation7 + $0x190] sm:$0xff]
    %v174 = vld [vmem:[#allocation7 + $0x198] sm:$0xff]
    %v175 = vld [vmem:[#allocation7 + $0x1a0] sm:$0xff]
    %v176 = vld [vmem:[#allocation7 + $0x1a8] sm:$0xff]
    %v177 = vld [vmem:[#allocation7 + $0x1b0] sm:$0xff]
    %v178 = vld [vmem:[#allocation7 + $0x1b8] sm:$0xff]
    %v179 = vld [vmem:[#allocation7 + $0x1c0] sm:$0xff]
    %v180 = vld [vmem:[#allocation7 + $0x1c8] sm:$0xff]
    %v181 = vld [vmem:[#allocation7 + $0x1d0] sm:$0xff]
    %v182 = vld [vmem:[#allocation7 + $0x1d8] sm:$0xff]
    %v183 = vld [vmem:[#allocation7 + $0x1e0] sm:$0xff]
    %v184 = vld [vmem:[#allocation7 + $0x1e8] sm:$0xff]
    %v185 = vld [vmem:[#allocation7 + $0x1f0] sm:$0xff]
    %v186 = vld [vmem:[#allocation7 + $0x1f8] sm:$0xff]
    %v187 = vld [vmem:[#allocation7 + $0x200] sm:$0xff]
    %v188 = vld [vmem:[#allocation7 + $0x208] sm:$0xff]
    %v189 = vld [vmem:[#allocation7 + $0x210] sm:$0xff]
    %v190 = vld [vmem:[#allocation7 + $0x218] sm:$0xff]
    %v191 = vld [vmem:[#allocation7 + $0x220] sm:$0xff]
    %v192 = vld [vmem:[#allocation7 + $0x228] sm:$0xff]
    %v193 = vld [vmem:[#allocation7 + $0x230] sm:$0xff]
    %v194 = vld [vmem:[#allocation7 + $0x238] sm:$0xff]
    %v195 = vld [vmem:[#allocation7 + $0x240] sm:$0xff]
    %v196 = vld [vmem:[#allocation7 + $0x248] sm:$0xff]
    %v197 = vld [vmem:[#allocation7 + $0x250] sm:$0xff]
    %v198 = vld [vmem:[#allocation7 + $0x258] sm:$0xff]
    %v199 = vld [vmem:[#allocation7 + $0x260] sm:$0xff]
    %v200 = vld [vmem:[#allocation7 + $0x268] sm:$0xff]
    %v201 = vld [vmem:[#allocation7 + $0x270] sm:$0xff]
    %v202 = vld [vmem:[#allocation7 + $0x278] sm:$0xff]
    %v203 = vld [vmem:[#allocation7 + $0x280] sm:$0xff]
    %v204 = vld [vmem:[#allocation7 + $0x288] sm:$0xff]
    %v205 = vld [vmem:[#allocation7 + $0x290] sm:$0xff]
    %v206 = vld [vmem:[#allocation7 + $0x298] sm:$0xff]
    %v207 = vld [vmem:[#allocation7 + $0x2a0] sm:$0xff]
    %v208 = vld [vmem:[#allocation7 + $0x2a8] sm:$0xff]
    %v209 = vld [vmem:[#allocation7 + $0x2b0] sm:$0xff]
    %v210 = vld [vmem:[#allocation7 + $0x2b8] sm:$0xff]
    %v211 = vld [vmem:[#allocation7 + $0x2c0] sm:$0xff]
    %v212 = vld [vmem:[#allocation7 + $0x2c8] sm:$0xff]
    %v213 = vld [vmem:[#allocation7 + $0x2d0] sm:$0xff]
    %v214 = vld [vmem:[#allocation7 + $0x2d8] sm:$0xff]
    %v215 = vld [vmem:[#allocation7 + $0x2e0] sm:$0xff]
    %v216 = vld [vmem:[#allocation7 + $0x2e8] sm:$0xff]
    %v217 = vld [vmem:[#allocation7 + $0x2f0] sm:$0xff]
    %v218 = vld [vmem:[#allocation7 + $0x2f8] sm:$0xff]
    %v219 = vld [vmem:[#allocation7 + $0x300] sm:$0xff]
    %v220 = vld [vmem:[#allocation7 + $0x308] sm:$0xff]
    %v221 = vld [vmem:[#allocation7 + $0x310] sm:$0xff]
    %v222 = vld [vmem:[#allocation7 + $0x318] sm:$0xff]
    %v223 = vld [vmem:[#allocation7 + $0x320] sm:$0xff]
    %v224 = vld [vmem:[#allocation7 + $0x328] sm:$0xff]
    %v225 = vld [vmem:[#allocation7 + $0x330] sm:$0xff]
    %v226 = vld [vmem:[#allocation7 + $0x338] sm:$0xff]
    %v227 = vld [vmem:[#allocation7 + $0x340] sm:$0xff]
    %v228 = vld [vmem:[#allocation7 + $0x348] sm:$0xff]
    %v229 = vld [vmem:[#allocation7 + $0x350] sm:$0xff]
    %v230 = vld [vmem:[#allocation7 + $0x358] sm:$0xff]
    %v231 = vld [vmem:[#allocation7 + $0x360] sm:$0xff]
    %v232 = vld [vmem:[#allocation7 + $0x368] sm:$0xff]
    %v233 = vld [vmem:[#allocation7 + $0x370] sm:$0xff]
    %v234 = vld [vmem:[#allocation7 + $0x378] sm:$0xff]
    %v235 = vld [vmem:[#allocation7 + $0x380] sm:$0xff]
    %v236 = vld [vmem:[#allocation7 + $0x388] sm:$0xff]
    %v237 = vld [vmem:[#allocation7 + $0x390] sm:$0xff]
    %v238 = vld [vmem:[#allocation7 + $0x398] sm:$0xff]
    %v239 = vld [vmem:[#allocation7 + $0x3a0] sm:$0xff]
    %v240 = vld [vmem:[#allocation7 + $0x3a8] sm:$0xff]
    %v241 = vld [vmem:[#allocation7 + $0x3b0] sm:$0xff]
    %v242 = vld [vmem:[#allocation7 + $0x3b8] sm:$0xff]
    %v243 = vld [vmem:[#allocation7 + $0x3c0] sm:$0xff]
    %v244 = vld [vmem:[#allocation7 + $0x3c8] sm:$0xff]
    %v245 = vld [vmem:[#allocation7 + $0x3d0] sm:$0xff]
    %v246 = vld [vmem:[#allocation7 + $0x3d8] sm:$0xff]
    %v247 = vld [vmem:[#allocation7 + $0x3e0] sm:$0xff]
    %v248 = vld [vmem:[#allocation7 + $0x3e8] sm:$0xff]
    %v249 = vld [vmem:[#allocation7 + $0x3f0] sm:$0xff]
    %v250 = vld [vmem:[#allocation7 + $0x3f8] sm:$0xff]
    %v251 = vld [vmem:[#allocation5] sm:$0xff]
    %v252 = vld [vmem:[#allocation5 + $0x8] sm:$0xff]
    %v253 = vld [vmem:[#allocation5 + $0x10] sm:$0xff]
    %v254 = vld [vmem:[#allocation5 + $0x18] sm:$0xff]
    %v255 = vld [vmem:[#allocation5 + $0x20] sm:$0xff]
    %v256 = vld [vmem:[#allocation5 + $0x28] sm:$0xff]
    %v257 = vld [vmem:[#allocation8] sm:$0xff]
    %v258 = vld [vmem:[#allocation8 + $0x8] sm:$0xff]
    %v259 = vld [vmem:[#allocation8 + $0x10] sm:$0xff]
    %v260 = vld [vmem:[#allocation8 + $0x18] sm:$0xff]
    %v261 = vld [vmem:[#allocation8 + $0x20] sm:$0xff]
    %v262 = vld [vmem:[#allocation8 + $0x28] sm:$0xff]
    %v263 = vld [vmem:[#allocation8 + $0x30] sm:$0xff]
    %v264 = vld [vmem:[#allocation8 + $0x38] sm:$0xff]
    %v265 = vld [vmem:[#allocation8 + $0x40] sm:$0xff]
    %v266 = vld [vmem:[#allocation8 + $0x48] sm:$0xff]
    %v267 = vld [vmem:[#allocation8 + $0x50] sm:$0xff]
    %v268 = vld [vmem:[#allocation8 + $0x58] sm:$0xff]
    %v269 = vld [vmem:[#allocation8 + $0x60] sm:$0xff]
    %v270 = vld [vmem:[#allocation8 + $0x68] sm:$0xff]
    %v271 = vld [vmem:[#allocation8 + $0x70] sm:$0xff]
    %v272 = vld [vmem:[#allocation8 + $0x78] sm:$0xff]
    %v273 = vld [vmem:[#allocation8 + $0x80] sm:$0xff]
    %v274 = vld [vmem:[#allocation8 + $0x88] sm:$0xff]
    %v275 = vld [vmem:[#allocation8 + $0x90] sm:$0xff]
    %v276 = vld [vmem:[#allocation8 + $0x98] sm:$0xff]
    %v277 = vld [vmem:[#allocation8 + $0xa0] sm:$0xff]
    %v278 = vld [vmem:[#allocation8 + $0xa8] sm:$0xff]
    %v279 = vld [vmem:[#allocation8 + $0xb0] sm:$0xff]
    %v280 = vld [vmem:[#allocation8 + $0xb8] sm:$0xff]
    %v281 = vld [vmem:[#allocation8 + $0xc0] sm:$0xff]
    %v282 = vld [vmem:[#allocation8 + $0xc8] sm:$0xff]
    %v283 = vld [vmem:[#allocation8 + $0xd0] sm:$0xff]
    %v284 = vld [vmem:[#allocation8 + $0xd8] sm:$0xff]
    %v285 = vld [vmem:[#allocation8 + $0xe0] sm:$0xff]
    %v286 = vld [vmem:[#allocation8 + $0xe8] sm:$0xff]
    %v287 = vld [vmem:[#allocation8 + $0xf0] sm:$0xff]
    %v288 = vld [vmem:[#allocation8 + $0xf8] sm:$0xff]
    %v289 = vld [vmem:[#allocation8 + $0x100] sm:$0xff]
    %v290 = vld [vmem:[#allocation8 + $0x108] sm:$0xff]
    %v291 = vld [vmem:[#allocation8 + $0x110] sm:$0xff]
    %v292 = vld [vmem:[#allocation8 + $0x118] sm:$0xff]
    %v293 = vld [vmem:[#allocation8 + $0x120] sm:$0xff]
    %v294 = vld [vmem:[#allocation8 + $0x128] sm:$0xff]
    %v295 = vld [vmem:[#allocation8 + $0x130] sm:$0xff]
    %v296 = vld [vmem:[#allocation8 + $0x138] sm:$0xff]
    %v297 = vld [vmem:[#allocation8 + $0x140] sm:$0xff]
    %v298 = vld [vmem:[#allocation8 + $0x148] sm:$0xff]
    %v299 = vld [vmem:[#allocation8 + $0x150] sm:$0xff]
    %v300 = vld [vmem:[#allocation8 + $0x158] sm:$0xff]
    %v301 = vld [vmem:[#allocation8 + $0x160] sm:$0xff]
    %v302 = vld [vmem:[#allocation8 + $0x168] sm:$0xff]
    %v303 = vld [vmem:[#allocation8 + $0x170] sm:$0xff]
    %v304 = vld [vmem:[#allocation8 + $0x178] sm:$0xff]
    %v305 = vld [vmem:[#allocation8 + $0x180] sm:$0xff]
    %v306 = vld [vmem:[#allocation8 + $0x188] sm:$0xff]
    %v307 = vld [vmem:[#allocation8 + $0x190] sm:$0xff]
    %v308 = vld [vmem:[#allocation8 + $0x198] sm:$0xff]
    %v309 = vld [vmem:[#allocation8 + $0x1a0] sm:$0xff]
    %v310 = vld [vmem:[#allocation8 + $0x1a8] sm:$0xff]
    %v311 = vld [vmem:[#allocation8 + $0x1b0] sm:$0xff]
    %v312 = vld [vmem:[#allocation8 + $0x1b8] sm:$0xff]
    %v313 = vld [vmem:[#allocation8 + $0x1c0] sm:$0xff]
    %v314 = vld [vmem:[#allocation8 + $0x1c8] sm:$0xff]
    %v315 = vld [vmem:[#allocation8 + $0x1d0] sm:$0xff]
    %v316 = vld [vmem:[#allocation8 + $0x1d8] sm:$0xff]
    %v317 = vld [vmem:[#allocation8 + $0x1e0] sm:$0xff]
    %v318 = vld [vmem:[#allocation8 + $0x1e8] sm:$0xff]
    %v319 = vld [vmem:[#allocation8 + $0x1f0] sm:$0xff]
    %v320 = vld [vmem:[#allocation8 + $0x1f8] sm:$0xff]
    %v321 = vld [vmem:[#allocation8 + $0x200] sm:$0xff]
    %v322 = vld [vmem:[#allocation8 + $0x208] sm:$0xff]
    %v323 = vld [vmem:[#allocation8 + $0x210] sm:$0xff]
    %v324 = vld [vmem:[#allocation8 + $0x218] sm:$0xff]
    %v325 = vld [vmem:[#allocation8 + $0x220] sm:$0xff]
    %v326 = vld [vmem:[#allocation8 + $0x228] sm:$0xff]
    %v327 = vld [vmem:[#allocation8 + $0x230] sm:$0xff]
    %v328 = vld [vmem:[#allocation8 + $0x238] sm:$0xff]
    %v329 = vld [vmem:[#allocation8 + $0x240] sm:$0xff]
    %v330 = vld [vmem:[#allocation8 + $0x248] sm:$0xff]
    %v331 = vld [vmem:[#allocation8 + $0x250] sm:$0xff]
    %v332 = vld [vmem:[#allocation8 + $0x258] sm:$0xff]
    %v333 = vld [vmem:[#allocation8 + $0x260] sm:$0xff]
    %v334 = vld [vmem:[#allocation8 + $0x268] sm:$0xff]
    %v335 = vld [vmem:[#allocation8 + $0x270] sm:$0xff]
    %v336 = vld [vmem:[#allocation8 + $0x278] sm:$0xff]
    %v337 = vld [vmem:[#allocation8 + $0x280] sm:$0xff]
    %v338 = vld [vmem:[#allocation8 + $0x288] sm:$0xff]
    %v339 = vld [vmem:[#allocation8 + $0x290] sm:$0xff]
    %v340 = vld [vmem:[#allocation8 + $0x298] sm:$0xff]
    %v341 = vld [vmem:[#allocation8 + $0x2a0] sm:$0xff]
    %v342 = vld [vmem:[#allocation8 + $0x2a8] sm:$0xff]
    %v343 = vld [vmem:[#allocation8 + $0x2b0] sm:$0xff]
    %v344 = vld [vmem:[#allocation8 + $0x2b8] sm:$0xff]
    %v345 = vld [vmem:[#allocation8 + $0x2c0] sm:$0xff]
    %v346 = vld [vmem:[#allocation8 + $0x2c8] sm:$0xff]
    %v347 = vld [vmem:[#allocation8 + $0x2d0] sm:$0xff]
    %v348 = vld [vmem:[#allocation8 + $0x2d8] sm:$0xff]
    %v349 = vld [vmem:[#allocation8 + $0x2e0] sm:$0xff]
    %v350 = vld [vmem:[#allocation8 + $0x2e8] sm:$0xff]
    %v351 = vld [vmem:[#allocation8 + $0x2f0] sm:$0xff]
    %v352 = vld [vmem:[#allocation8 + $0x2f8] sm:$0xff]
    %v353 = vld [vmem:[#allocation8 + $0x300] sm:$0xff]
    %v354 = vld [vmem:[#allocation8 + $0x308] sm:$0xff]
    %v355 = vld [vmem:[#allocation8 + $0x310] sm:$0xff]
    %v356 = vld [vmem:[#allocation8 + $0x318] sm:$0xff]
    %v357 = vld [vmem:[#allocation8 + $0x320] sm:$0xff]
    %v358 = vld [vmem:[#allocation8 + $0x328] sm:$0xff]
    %v359 = vld [vmem:[#allocation8 + $0x330] sm:$0xff]
    %v360 = vld [vmem:[#allocation8 + $0x338] sm:$0xff]
    %v361 = vld [vmem:[#allocation8 + $0x340] sm:$0xff]
    %v362 = vld [vmem:[#allocation8 + $0x348] sm:$0xff]
    %v363 = vld [vmem:[#allocation8 + $0x350] sm:$0xff]
    %v364 = vld [vmem:[#allocation8 + $0x358] sm:$0xff]
    %v365 = vld [vmem:[#allocation8 + $0x360] sm:$0xff]
    %v366 = vld [vmem:[#allocation8 + $0x368] sm:$0xff]
    %v367 = vld [vmem:[#allocation8 + $0x370] sm:$0xff]
    %v368 = vld [vmem:[#allocation8 + $0x378] sm:$0xff]
    %v369 = vld [vmem:[#allocation8 + $0x380] sm:$0xff]
    %v370 = vld [vmem:[#allocation8 + $0x388] sm:$0xff]
    %v371 = vld [vmem:[#allocation8 + $0x390] sm:$0xff]
    %v372 = vld [vmem:[#allocation8 + $0x398] sm:$0xff]
    %v373 = vld [vmem:[#allocation8 + $0x3a0] sm:$0xff]
    %v374 = vld [vmem:[#allocation8 + $0x3a8] sm:$0xff]
    %v375 = vld [vmem:[#allocation8 + $0x3b0] sm:$0xff]
    %v376 = vld [vmem:[#allocation8 + $0x3b8] sm:$0xff]
    %v377 = vld [vmem:[#allocation8 + $0x3c0] sm:$0xff]
    %v378 = vld [vmem:[#allocation8 + $0x3c8] sm:$0xff]
    %v379 = vld [vmem:[#allocation8 + $0x3d0] sm:$0xff]
    %v380 = vld [vmem:[#allocation8 + $0x3d8] sm:$0xff]
    %v381 = vld [vmem:[#allocation8 + $0x3e0] sm:$0xff]
    %v382 = vld [vmem:[#allocation8 + $0x3e8] sm:$0xff]
    %v383 = vld [vmem:[#allocation8 + $0x3f0] sm:$0xff]
    %v384 = vld [vmem:[#allocation8 + $0x3f8] sm:$0xff]
    %v385 = vld [vmem:[#allocation8 + $0x400] sm:$0xff]
    %v386 = vld [vmem:[#allocation8 + $0x408] sm:$0xff]
    %v387 = vld [vmem:[#allocation8 + $0x410] sm:$0xff]
    %v388 = vld [vmem:[#allocation8 + $0x418] sm:$0xff]
    %v389 = vld [vmem:[#allocation8 + $0x420] sm:$0xff]
    %v390 = vld [vmem:[#allocation8 + $0x428] sm:$0xff]
    %v391 = vld [vmem:[#allocation8 + $0x430] sm:$0xff]
    %v392 = vld [vmem:[#allocation8 + $0x438] sm:$0xff]
    %v393 = vld [vmem:[#allocation8 + $0x440] sm:$0xff]
    %v394 = vld [vmem:[#allocation8 + $0x448] sm:$0xff]
    %v395 = vld [vmem:[#allocation8 + $0x450] sm:$0xff]
    %v396 = vld [vmem:[#allocation8 + $0x458] sm:$0xff]
    %v397 = vld [vmem:[#allocation8 + $0x460] sm:$0xff]
    %v398 = vld [vmem:[#allocation8 + $0x468] sm:$0xff]
    %v399 = vld [vmem:[#allocation8 + $0x470] sm:$0xff]
    %v400 = vld [vmem:[#allocation8 + $0x478] sm:$0xff]
    %v401 = vld [vmem:[#allocation8 + $0x480] sm:$0xff]
    %v402 = vld [vmem:[#allocation8 + $0x488] sm:$0xff]
    %v403 = vld [vmem:[#allocation8 + $0x490] sm:$0xff]
    %v404 = vld [vmem:[#allocation8 + $0x498] sm:$0xff]
    %v405 = vld [vmem:[#allocation8 + $0x4a0] sm:$0xff]
    %v406 = vld [vmem:[#allocation8 + $0x4a8] sm:$0xff]
    %v407 = vld [vmem:[#allocation8 + $0x4b0] sm:$0xff]
    %v408 = vld [vmem:[#allocation8 + $0x4b8] sm:$0xff]
    %v409 = vld [vmem:[#allocation8 + $0x4c0] sm:$0xff]
    %v410 = vld [vmem:[#allocation8 + $0x4c8] sm:$0xff]
    %v411 = vld [vmem:[#allocation8 + $0x4d0] sm:$0xff]
    %v412 = vld [vmem:[#allocation8 + $0x4d8] sm:$0xff]
    %v413 = vld [vmem:[#allocation8 + $0x4e0] sm:$0xff]
    %v414 = vld [vmem:[#allocation8 + $0x4e8] sm:$0xff]
    %v415 = vld [vmem:[#allocation8 + $0x4f0] sm:$0xff]
    %v416 = vld [vmem:[#allocation8 + $0x4f8] sm:$0xff]
    %v417 = vld [vmem:[#allocation8 + $0x500] sm:$0xff]
    %v418 = vld [vmem:[#allocation8 + $0x508] sm:$0xff]
    %v419 = vld [vmem:[#allocation8 + $0x510] sm:$0xff]
    %v420 = vld [vmem:[#allocation8 + $0x518] sm:$0xff]
    %v421 = vld [vmem:[#allocation8 + $0x520] sm:$0xff]
    %v422 = vld [vmem:[#allocation8 + $0x528] sm:$0xff]
    %v423 = vld [vmem:[#allocation8 + $0x530] sm:$0xff]
    %v424 = vld [vmem:[#allocation8 + $0x538] sm:$0xff]
    %v425 = vld [vmem:[#allocation8 + $0x540] sm:$0xff]
    %v426 = vld [vmem:[#allocation8 + $0x548] sm:$0xff]
    %v427 = vld [vmem:[#allocation8 + $0x550] sm:$0xff]
    %v428 = vld [vmem:[#allocation8 + $0x558] sm:$0xff]
    %v429 = vld [vmem:[#allocation8 + $0x560] sm:$0xff]
    %v430 = vld [vmem:[#allocation8 + $0x568] sm:$0xff]
    %v431 = vld [vmem:[#allocation8 + $0x570] sm:$0xff]
    %v432 = vld [vmem:[#allocation8 + $0x578] sm:$0xff]
    %v433 = vld [vmem:[#allocation8 + $0x580] sm:$0xff]
    %v434 = vld [vmem:[#allocation8 + $0x588] sm:$0xff]
    %v435 = vld [vmem:[#allocation8 + $0x590] sm:$0xff]
    %v436 = vld [vmem:[#allocation8 + $0x598] sm:$0xff]
    %v437 = vld [vmem:[#allocation8 + $0x5a0] sm:$0xff]
    %v438 = vld [vmem:[#allocation8 + $0x5a8] sm:$0xff]
    %v439 = vld [vmem:[#allocation8 + $0x5b0] sm:$0xff]
    %v440 = vld [vmem:[#allocation8 + $0x5b8] sm:$0xff]
    %v441 = vld [vmem:[#allocation8 + $0x5c0] sm:$0xff]
    %v442 = vld [vmem:[#allocation8 + $0x5c8] sm:$0xff]
    %v443 = vld [vmem:[#allocation8 + $0x5d0] sm:$0xff]
    %v444 = vld [vmem:[#allocation8 + $0x5d8] sm:$0xff]
    %v445 = vld [vmem:[#allocation8 + $0x5e0] sm:$0xff]
    %v446 = vld [vmem:[#allocation8 + $0x5e8] sm:$0xff]
    %v447 = vld [vmem:[#allocation8 + $0x5f0] sm:$0xff]
    %v448 = vld [vmem:[#allocation8 + $0x5f8] sm:$0xff]
    %v455 = vunpack.c.l.b16 %v251
    %v456 = vunpack.c.h.b16 %v251
    %v457 = vunpack.c.l.b16 %v252
    %v458 = vunpack.c.h.b16 %v252
    %v459 = vunpack.c.l.b16 %v253
    %v460 = vunpack.c.h.b16 %v253
    %v461 = vunpack.c.l.b16 %v254
    %v462 = vunpack.c.h.b16 %v254
    %v463 = vunpack.c.l.b16 %v255
    %v464 = vunpack.c.h.b16 %v255
    %v465 = vunpack.c.l.b16 %v256
    %v466 = vunpack.c.h.b16 %v256
    %v467 = vpack.c.b16 %v461, %v455
    %v468 = vpack.c.b16 %v462, %v456
    %v469 = vpack.c.b16 %v463, %v457
    %v470 = vpack.c.b16 %v464, %v458
    %v471 = vpack.c.b16 %v465, %v459
    %v472 = vpack.c.b16 %v466, %v460
    %v671 = vunpack.c.l.b16 %v257
    %v672 = vunpack.c.h.b16 %v257
    %v673 = vunpack.c.l.b16 %v258
    %v674 = vunpack.c.h.b16 %v258
    %v675 = vunpack.c.l.b16 %v259
    %v676 = vunpack.c.h.b16 %v259
    %v677 = vunpack.c.l.b16 %v260
    %v678 = vunpack.c.h.b16 %v260
    %v679 = vunpack.c.l.b16 %v261
    %v680 = vunpack.c.h.b16 %v261
    %v681 = vunpack.c.l.b16 %v262
    %v682 = vunpack.c.h.b16 %v262
    %v683 = vunpack.c.l.b16 %v263
    %v684 = vunpack.c.h.b16 %v263
    %v685 = vunpack.c.l.b16 %v264
    %v686 = vunpack.c.h.b16 %v264
    %v687 = vunpack.c.l.b16 %v265
    %v688 = vunpack.c.h.b16 %v265
    %v689 = vunpack.c.l.b16 %v266
    %v690 = vunpack.c.h.b16 %v266
    %v691 = vunpack.c.l.b16 %v267
    %v692 = vunpack.c.h.b16 %v267
    %v693 = vunpack.c.l.b16 %v268
    %v694 = vunpack.c.h.b16 %v268
    %v695 = vunpack.c.l.b16 %v269
    %v696 = vunpack.c.h.b16 %v269
    %v697 = vunpack.c.l.b16 %v270
    %v698 = vunpack.c.h.b16 %v270
    %v699 = vunpack.c.l.b16 %v271
    %v700 = vunpack.c.h.b16 %v271
    %v701 = vunpack.c.l.b16 %v272
    %v702 = vunpack.c.h.b16 %v272
    %v703 = vunpack.c.l.b16 %v273
    %v704 = vunpack.c.h.b16 %v273
    %v705 = vunpack.c.l.b16 %v274
    %v706 = vunpack.c.h.b16 %v274
    %v707 = vunpack.c.l.b16 %v275
    %v708 = vunpack.c.h.b16 %v275
    %v709 = vunpack.c.l.b16 %v276
    %v710 = vunpack.c.h.b16 %v276
    %v711 = vunpack.c.l.b16 %v277
    %v712 = vunpack.c.h.b16 %v277
    %v713 = vunpack.c.l.b16 %v278
    %v714 = vunpack.c.h.b16 %v278
    %v715 = vunpack.c.l.b16 %v279
    %v716 = vunpack.c.h.b16 %v279
    %v717 = vunpack.c.l.b16 %v280
    %v718 = vunpack.c.h.b16 %v280
    %v719 = vunpack.c.l.b16 %v281
    %v720 = vunpack.c.h.b16 %v281
    %v721 = vunpack.c.l.b16 %v282
    %v722 = vunpack.c.h.b16 %v282
    %v723 = vunpack.c.l.b16 %v283
    %v724 = vunpack.c.h.b16 %v283
    %v725 = vunpack.c.l.b16 %v284
    %v726 = vunpack.c.h.b16 %v284
    %v727 = vunpack.c.l.b16 %v285
    %v728 = vunpack.c.h.b16 %v285
    %v729 = vunpack.c.l.b16 %v286
    %v730 = vunpack.c.h.b16 %v286
    %v731 = vunpack.c.l.b16 %v287
    %v732 = vunpack.c.h.b16 %v287
    %v733 = vunpack.c.l.b16 %v288
    %v734 = vunpack.c.h.b16 %v288
    %v735 = vunpack.c.l.b16 %v289
    %v736 = vunpack.c.h.b16 %v289
    %v737 = vunpack.c.l.b16 %v290
    %v738 = vunpack.c.h.b16 %v290
    %v739 = vunpack.c.l.b16 %v291
    %v740 = vunpack.c.h.b16 %v291
    %v741 = vunpack.c.l.b16 %v292
    %v742 = vunpack.c.h.b16 %v292
    %v743 = vunpack.c.l.b16 %v293
    %v744 = vunpack.c.h.b16 %v293
    %v745 = vunpack.c.l.b16 %v294
    %v746 = vunpack.c.h.b16 %v294
    %v747 = vunpack.c.l.b16 %v295
    %v748 = vunpack.c.h.b16 %v295
    %v749 = vunpack.c.l.b16 %v296
    %v750 = vunpack.c.h.b16 %v296
    %v751 = vunpack.c.l.b16 %v297
    %v752 = vunpack.c.h.b16 %v297
    %v753 = vunpack.c.l.b16 %v298
    %v754 = vunpack.c.h.b16 %v298
    %v755 = vunpack.c.l.b16 %v299
    %v756 = vunpack.c.h.b16 %v299
    %v757 = vunpack.c.l.b16 %v300
    %v758 = vunpack.c.h.b16 %v300
    %v759 = vunpack.c.l.b16 %v301
    %v760 = vunpack.c.h.b16 %v301
    %v761 = vunpack.c.l.b16 %v302
    %v762 = vunpack.c.h.b16 %v302
    %v763 = vunpack.c.l.b16 %v303
    %v764 = vunpack.c.h.b16 %v303
    %v765 = vunpack.c.l.b16 %v304
    %v766 = vunpack.c.h.b16 %v304
    %v767 = vunpack.c.l.b16 %v305
    %v768 = vunpack.c.h.b16 %v305
    %v769 = vunpack.c.l.b16 %v306
    %v770 = vunpack.c.h.b16 %v306
    %v771 = vunpack.c.l.b16 %v307
    %v772 = vunpack.c.h.b16 %v307
    %v773 = vunpack.c.l.b16 %v308
    %v774 = vunpack.c.h.b16 %v308
    %v775 = vunpack.c.l.b16 %v309
    %v776 = vunpack.c.h.b16 %v309
    %v777 = vunpack.c.l.b16 %v310
    %v778 = vunpack.c.h.b16 %v310
    %v779 = vunpack.c.l.b16 %v311
    %v780 = vunpack.c.h.b16 %v311
    %v781 = vunpack.c.l.b16 %v312
    %v782 = vunpack.c.h.b16 %v312
    %v783 = vunpack.c.l.b16 %v313
    %v784 = vunpack.c.h.b16 %v313
    %v785 = vunpack.c.l.b16 %v314
    %v786 = vunpack.c.h.b16 %v314
    %v787 = vunpack.c.l.b16 %v315
    %v788 = vunpack.c.h.b16 %v315
    %v789 = vunpack.c.l.b16 %v316
    %v790 = vunpack.c.h.b16 %v316
    %v791 = vunpack.c.l.b16 %v317
    %v792 = vunpack.c.h.b16 %v317
    %v793 = vunpack.c.l.b16 %v318
    %v794 = vunpack.c.h.b16 %v318
    %v795 = vunpack.c.l.b16 %v319
    %v796 = vunpack.c.h.b16 %v319
    %v797 = vunpack.c.l.b16 %v320
    %v798 = vunpack.c.h.b16 %v320
    %v799 = vunpack.c.l.b16 %v321
    %v800 = vunpack.c.h.b16 %v321
    %v801 = vunpack.c.l.b16 %v322
    %v802 = vunpack.c.h.b16 %v322
    %v803 = vunpack.c.l.b16 %v323
    %v804 = vunpack.c.h.b16 %v323
    %v805 = vunpack.c.l.b16 %v324
    %v806 = vunpack.c.h.b16 %v324
    %v807 = vunpack.c.l.b16 %v325
    %v808 = vunpack.c.h.b16 %v325
    %v809 = vunpack.c.l.b16 %v326
    %v810 = vunpack.c.h.b16 %v326
    %v811 = vunpack.c.l.b16 %v327
    %v812 = vunpack.c.h.b16 %v327
    %v813 = vunpack.c.l.b16 %v328
    %v814 = vunpack.c.h.b16 %v328
    %v815 = vunpack.c.l.b16 %v329
    %v816 = vunpack.c.h.b16 %v329
    %v817 = vunpack.c.l.b16 %v330
    %v818 = vunpack.c.h.b16 %v330
    %v819 = vunpack.c.l.b16 %v331
    %v820 = vunpack.c.h.b16 %v331
    %v821 = vunpack.c.l.b16 %v332
    %v822 = vunpack.c.h.b16 %v332
    %v823 = vunpack.c.l.b16 %v333
    %v824 = vunpack.c.h.b16 %v333
    %v825 = vunpack.c.l.b16 %v334
    %v826 = vunpack.c.h.b16 %v334
    %v827 = vunpack.c.l.b16 %v335
    %v828 = vunpack.c.h.b16 %v335
    %v829 = vunpack.c.l.b16 %v336
    %v830 = vunpack.c.h.b16 %v336
    %v831 = vunpack.c.l.b16 %v337
    %v832 = vunpack.c.h.b16 %v337
    %v833 = vunpack.c.l.b16 %v338
    %v834 = vunpack.c.h.b16 %v338
    %v835 = vunpack.c.l.b16 %v339
    %v836 = vunpack.c.h.b16 %v339
    %v837 = vunpack.c.l.b16 %v340
    %v838 = vunpack.c.h.b16 %v340
    %v839 = vunpack.c.l.b16 %v341
    %v840 = vunpack.c.h.b16 %v341
    %v841 = vunpack.c.l.b16 %v342
    %v842 = vunpack.c.h.b16 %v342
    %v843 = vunpack.c.l.b16 %v343
    %v844 = vunpack.c.h.b16 %v343
    %v845 = vunpack.c.l.b16 %v344
    %v846 = vunpack.c.h.b16 %v344
    %v847 = vunpack.c.l.b16 %v345
    %v848 = vunpack.c.h.b16 %v345
    %v849 = vunpack.c.l.b16 %v346
    %v850 = vunpack.c.h.b16 %v346
    %v851 = vunpack.c.l.b16 %v347
    %v852 = vunpack.c.h.b16 %v347
    %v853 = vunpack.c.l.b16 %v348
    %v854 = vunpack.c.h.b16 %v348
    %v855 = vunpack.c.l.b16 %v349
    %v856 = vunpack.c.h.b16 %v349
    %v857 = vunpack.c.l.b16 %v350
    %v858 = vunpack.c.h.b16 %v350
    %v859 = vunpack.c.l.b16 %v351
    %v860 = vunpack.c.h.b16 %v351
    %v861 = vunpack.c.l.b16 %v352
    %v862 = vunpack.c.h.b16 %v352
    %v863 = vunpack.c.l.b16 %v353
    %v864 = vunpack.c.h.b16 %v353
    %v865 = vunpack.c.l.b16 %v354
    %v866 = vunpack.c.h.b16 %v354
    %v867 = vunpack.c.l.b16 %v355
    %v868 = vunpack.c.h.b16 %v355
    %v869 = vunpack.c.l.b16 %v356
    %v870 = vunpack.c.h.b16 %v356
    %v871 = vunpack.c.l.b16 %v357
    %v872 = vunpack.c.h.b16 %v357
    %v873 = vunpack.c.l.b16 %v358
    %v874 = vunpack.c.h.b16 %v358
    %v875 = vunpack.c.l.b16 %v359
    %v876 = vunpack.c.h.b16 %v359
    %v877 = vunpack.c.l.b16 %v360
    %v878 = vunpack.c.h.b16 %v360
    %v879 = vunpack.c.l.b16 %v361
    %v880 = vunpack.c.h.b16 %v361
    %v881 = vunpack.c.l.b16 %v362
    %v882 = vunpack.c.h.b16 %v362
    %v883 = vunpack.c.l.b16 %v363
    %v884 = vunpack.c.h.b16 %v363
    %v885 = vunpack.c.l.b16 %v364
    %v886 = vunpack.c.h.b16 %v364
    %v887 = vunpack.c.l.b16 %v365
    %v888 = vunpack.c.h.b16 %v365
    %v889 = vunpack.c.l.b16 %v366
    %v890 = vunpack.c.h.b16 %v366
    %v891 = vunpack.c.l.b16 %v367
    %v892 = vunpack.c.h.b16 %v367
    %v893 = vunpack.c.l.b16 %v368
    %v894 = vunpack.c.h.b16 %v368
    %v895 = vunpack.c.l.b16 %v369
    %v896 = vunpack.c.h.b16 %v369
    %v897 = vunpack.c.l.b16 %v370
    %v898 = vunpack.c.h.b16 %v370
    %v899 = vunpack.c.l.b16 %v371
    %v900 = vunpack.c.h.b16 %v371
    %v901 = vunpack.c.l.b16 %v372
    %v902 = vunpack.c.h.b16 %v372
    %v903 = vunpack.c.l.b16 %v373
    %v904 = vunpack.c.h.b16 %v373
    %v905 = vunpack.c.l.b16 %v374
    %v906 = vunpack.c.h.b16 %v374
    %v907 = vunpack.c.l.b16 %v375
    %v908 = vunpack.c.h.b16 %v375
    %v909 = vunpack.c.l.b16 %v376
    %v910 = vunpack.c.h.b16 %v376
    %v911 = vunpack.c.l.b16 %v377
    %v912 = vunpack.c.h.b16 %v377
    %v913 = vunpack.c.l.b16 %v378
    %v914 = vunpack.c.h.b16 %v378
    %v915 = vunpack.c.l.b16 %v379
    %v916 = vunpack.c.h.b16 %v379
    %v917 = vunpack.c.l.b16 %v380
    %v918 = vunpack.c.h.b16 %v380
    %v919 = vunpack.c.l.b16 %v381
    %v920 = vunpack.c.h.b16 %v381
    %v921 = vunpack.c.l.b16 %v382
    %v922 = vunpack.c.h.b16 %v382
    %v923 = vunpack.c.l.b16 %v383
    %v924 = vunpack.c.h.b16 %v383
    %v925 = vunpack.c.l.b16 %v384
    %v926 = vunpack.c.h.b16 %v384
    %v927 = vunpack.c.l.b16 %v385
    %v928 = vunpack.c.h.b16 %v385
    %v929 = vunpack.c.l.b16 %v386
    %v930 = vunpack.c.h.b16 %v386
    %v931 = vunpack.c.l.b16 %v387
    %v932 = vunpack.c.h.b16 %v387
    %v933 = vunpack.c.l.b16 %v388
    %v934 = vunpack.c.h.b16 %v388
    %v935 = vunpack.c.l.b16 %v389
    %v936 = vunpack.c.h.b16 %v389
    %v937 = vunpack.c.l.b16 %v390
    %v938 = vunpack.c.h.b16 %v390
    %v939 = vunpack.c.l.b16 %v391
    %v940 = vunpack.c.h.b16 %v391
    %v941 = vunpack.c.l.b16 %v392
    %v942 = vunpack.c.h.b16 %v392
    %v943 = vunpack.c.l.b16 %v393
    %v944 = vunpack.c.h.b16 %v393
    %v945 = vunpack.c.l.b16 %v394
    %v946 = vunpack.c.h.b16 %v394
    %v947 = vunpack.c.l.b16 %v395
    %v948 = vunpack.c.h.b16 %v395
    %v949 = vunpack.c.l.b16 %v396
    %v950 = vunpack.c.h.b16 %v396
    %v951 = vunpack.c.l.b16 %v397
    %v952 = vunpack.c.h.b16 %v397
    %v953 = vunpack.c.l.b16 %v398
    %v954 = vunpack.c.h.b16 %v398
    %v955 = vunpack.c.l.b16 %v399
    %v956 = vunpack.c.h.b16 %v399
    %v957 = vunpack.c.l.b16 %v400
    %v958 = vunpack.c.h.b16 %v400
    %v959 = vunpack.c.l.b16 %v401
    %v960 = vunpack.c.h.b16 %v401
    %v961 = vunpack.c.l.b16 %v402
    %v962 = vunpack.c.h.b16 %v402
    %v963 = vunpack.c.l.b16 %v403
    %v964 = vunpack.c.h.b16 %v403
    %v965 = vunpack.c.l.b16 %v404
    %v966 = vunpack.c.h.b16 %v404
    %v967 = vunpack.c.l.b16 %v405
    %v968 = vunpack.c.h.b16 %v405
    %v969 = vunpack.c.l.b16 %v406
    %v970 = vunpack.c.h.b16 %v406
    %v971 = vunpack.c.l.b16 %v407
    %v972 = vunpack.c.h.b16 %v407
    %v973 = vunpack.c.l.b16 %v408
    %v974 = vunpack.c.h.b16 %v408
    %v975 = vunpack.c.l.b16 %v409
    %v976 = vunpack.c.h.b16 %v409
    %v977 = vunpack.c.l.b16 %v410
    %v978 = vunpack.c.h.b16 %v410
    %v979 = vunpack.c.l.b16 %v411
    %v980 = vunpack.c.h.b16 %v411
    %v981 = vunpack.c.l.b16 %v412
    %v982 = vunpack.c.h.b16 %v412
    %v983 = vunpack.c.l.b16 %v413
    %v984 = vunpack.c.h.b16 %v413
    %v985 = vunpack.c.l.b16 %v414
    %v986 = vunpack.c.h.b16 %v414
    %v987 = vunpack.c.l.b16 %v415
    %v988 = vunpack.c.h.b16 %v415
    %v989 = vunpack.c.l.b16 %v416
    %v990 = vunpack.c.h.b16 %v416
    %v991 = vunpack.c.l.b16 %v417
    %v992 = vunpack.c.h.b16 %v417
    %v993 = vunpack.c.l.b16 %v418
    %v994 = vunpack.c.h.b16 %v418
    %v995 = vunpack.c.l.b16 %v419
    %v996 = vunpack.c.h.b16 %v419
    %v997 = vunpack.c.l.b16 %v420
    %v998 = vunpack.c.h.b16 %v420
    %v999 = vunpack.c.l.b16 %v421
    %v1000 = vunpack.c.h.b16 %v421
    %v1001 = vunpack.c.l.b16 %v422
    %v1002 = vunpack.c.h.b16 %v422
    %v1003 = vunpack.c.l.b16 %v423
    %v1004 = vunpack.c.h.b16 %v423
    %v1005 = vunpack.c.l.b16 %v424
    %v1006 = vunpack.c.h.b16 %v424
    %v1007 = vunpack.c.l.b16 %v425
    %v1008 = vunpack.c.h.b16 %v425
    %v1009 = vunpack.c.l.b16 %v426
    %v1010 = vunpack.c.h.b16 %v426
    %v1011 = vunpack.c.l.b16 %v427
    %v1012 = vunpack.c.h.b16 %v427
    %v1013 = vunpack.c.l.b16 %v428
    %v1014 = vunpack.c.h.b16 %v428
    %v1015 = vunpack.c.l.b16 %v429
    %v1016 = vunpack.c.h.b16 %v429
    %v1017 = vunpack.c.l.b16 %v430
    %v1018 = vunpack.c.h.b16 %v430
    %v1019 = vunpack.c.l.b16 %v431
    %v1020 = vunpack.c.h.b16 %v431
    %v1021 = vunpack.c.l.b16 %v432
    %v1022 = vunpack.c.h.b16 %v432
    %v1023 = vunpack.c.l.b16 %v433
    %v1024 = vunpack.c.h.b16 %v433
    %v1025 = vunpack.c.l.b16 %v434
    %v1026 = vunpack.c.h.b16 %v434
    %v1027 = vunpack.c.l.b16 %v435
    %v1028 = vunpack.c.h.b16 %v435
    %v1029 = vunpack.c.l.b16 %v436
    %v1030 = vunpack.c.h.b16 %v436
    %v1031 = vunpack.c.l.b16 %v437
    %v1032 = vunpack.c.h.b16 %v437
    %v1033 = vunpack.c.l.b16 %v438
    %v1034 = vunpack.c.h.b16 %v438
    %v1035 = vunpack.c.l.b16 %v439
    %v1036 = vunpack.c.h.b16 %v439
    %v1037 = vunpack.c.l.b16 %v440
    %v1038 = vunpack.c.h.b16 %v440
    %v1039 = vunpack.c.l.b16 %v441
    %v1040 = vunpack.c.h.b16 %v441
    %v1041 = vunpack.c.l.b16 %v442
    %v1042 = vunpack.c.h.b16 %v442
    %v1043 = vunpack.c.l.b16 %v443
    %v1044 = vunpack.c.h.b16 %v443
    %v1045 = vunpack.c.l.b16 %v444
    %v1046 = vunpack.c.h.b16 %v444
    %v1047 = vunpack.c.l.b16 %v445
    %v1048 = vunpack.c.h.b16 %v445
    %v1049 = vunpack.c.l.b16 %v446
    %v1050 = vunpack.c.h.b16 %v446
    %v1051 = vunpack.c.l.b16 %v447
    %v1052 = vunpack.c.h.b16 %v447
    %v1053 = vunpack.c.l.b16 %v448
    %v1054 = vunpack.c.h.b16 %v448
    %v1055 = vpack.c.b16 %v675, %v671
    %v1056 = vpack.c.b16 %v676, %v672
    %v1057 = vpack.c.b16 %v677, %v673
    %v1058 = vpack.c.b16 %v678, %v674
    %v1059 = vpack.c.b16 %v683, %v679
    %v1060 = vpack.c.b16 %v684, %v680
    %v1061 = vpack.c.b16 %v685, %v681
    %v1062 = vpack.c.b16 %v686, %v682
    %v1063 = vpack.c.b16 %v691, %v687
    %v1064 = vpack.c.b16 %v692, %v688
    %v1065 = vpack.c.b16 %v693, %v689
    %v1066 = vpack.c.b16 %v694, %v690
    %v1067 = vpack.c.b16 %v699, %v695
    %v1068 = vpack.c.b16 %v700, %v696
    %v1069 = vpack.c.b16 %v701, %v697
    %v1070 = vpack.c.b16 %v702, %v698
    %v1071 = vpack.c.b16 %v707, %v703
    %v1072 = vpack.c.b16 %v708, %v704
    %v1073 = vpack.c.b16 %v709, %v705
    %v1074 = vpack.c.b16 %v710, %v706
    %v1075 = vpack.c.b16 %v715, %v711
    %v1076 = vpack.c.b16 %v716, %v712
    %v1077 = vpack.c.b16 %v717, %v713
    %v1078 = vpack.c.b16 %v718, %v714
    %v1079 = vpack.c.b16 %v723, %v719
    %v1080 = vpack.c.b16 %v724, %v720
    %v1081 = vpack.c.b16 %v725, %v721
    %v1082 = vpack.c.b16 %v726, %v722
    %v1083 = vpack.c.b16 %v731, %v727
    %v1084 = vpack.c.b16 %v732, %v728
    %v1085 = vpack.c.b16 %v733, %v729
    %v1086 = vpack.c.b16 %v734, %v730
    %v1087 = vpack.c.b16 %v739, %v735
    %v1088 = vpack.c.b16 %v740, %v736
    %v1089 = vpack.c.b16 %v741, %v737
    %v1090 = vpack.c.b16 %v742, %v738
    %v1091 = vpack.c.b16 %v747, %v743
    %v1092 = vpack.c.b16 %v748, %v744
    %v1093 = vpack.c.b16 %v749, %v745
    %v1094 = vpack.c.b16 %v750, %v746
    %v1095 = vpack.c.b16 %v755, %v751
    %v1096 = vpack.c.b16 %v756, %v752
    %v1097 = vpack.c.b16 %v757, %v753
    %v1098 = vpack.c.b16 %v758, %v754
    %v1099 = vpack.c.b16 %v763, %v759
    %v1100 = vpack.c.b16 %v764, %v760
    %v1101 = vpack.c.b16 %v765, %v761
    %v1102 = vpack.c.b16 %v766, %v762
    %v1103 = vpack.c.b16 %v771, %v767
    %v1104 = vpack.c.b16 %v772, %v768
    %v1105 = vpack.c.b16 %v773, %v769
    %v1106 = vpack.c.b16 %v774, %v770
    %v1107 = vpack.c.b16 %v779, %v775
    %v1108 = vpack.c.b16 %v780, %v776
    %v1109 = vpack.c.b16 %v781, %v777
    %v1110 = vpack.c.b16 %v782, %v778
    %v1111 = vpack.c.b16 %v787, %v783
    %v1112 = vpack.c.b16 %v788, %v784
    %v1113 = vpack.c.b16 %v789, %v785
    %v1114 = vpack.c.b16 %v790, %v786
    %v1115 = vpack.c.b16 %v795, %v791
    %v1116 = vpack.c.b16 %v796, %v792
    %v1117 = vpack.c.b16 %v797, %v793
    %v1118 = vpack.c.b16 %v798, %v794
    %v1119 = vpack.c.b16 %v803, %v799
    %v1120 = vpack.c.b16 %v804, %v800
    %v1121 = vpack.c.b16 %v805, %v801
    %v1122 = vpack.c.b16 %v806, %v802
    %v1123 = vpack.c.b16 %v811, %v807
    %v1124 = vpack.c.b16 %v812, %v808
    %v1125 = vpack.c.b16 %v813, %v809
    %v1126 = vpack.c.b16 %v814, %v810
    %v1127 = vpack.c.b16 %v819, %v815
    %v1128 = vpack.c.b16 %v820, %v816
    %v1129 = vpack.c.b16 %v821, %v817
    %v1130 = vpack.c.b16 %v822, %v818
    %v1131 = vpack.c.b16 %v827, %v823
    %v1132 = vpack.c.b16 %v828, %v824
    %v1133 = vpack.c.b16 %v829, %v825
    %v1134 = vpack.c.b16 %v830, %v826
    %v1135 = vpack.c.b16 %v835, %v831
    %v1136 = vpack.c.b16 %v836, %v832
    %v1137 = vpack.c.b16 %v837, %v833
    %v1138 = vpack.c.b16 %v838, %v834
    %v1139 = vpack.c.b16 %v843, %v839
    %v1140 = vpack.c.b16 %v844, %v840
    %v1141 = vpack.c.b16 %v845, %v841
    %v1142 = vpack.c.b16 %v846, %v842
    %v1143 = vpack.c.b16 %v851, %v847
    %v1144 = vpack.c.b16 %v852, %v848
    %v1145 = vpack.c.b16 %v853, %v849
    %v1146 = vpack.c.b16 %v854, %v850
    %v1147 = vpack.c.b16 %v859, %v855
    %v1148 = vpack.c.b16 %v860, %v856
    %v1149 = vpack.c.b16 %v861, %v857
    %v1150 = vpack.c.b16 %v862, %v858
    %v1151 = vpack.c.b16 %v867, %v863
    %v1152 = vpack.c.b16 %v868, %v864
    %v1153 = vpack.c.b16 %v869, %v865
    %v1154 = vpack.c.b16 %v870, %v866
    %v1155 = vpack.c.b16 %v875, %v871
    %v1156 = vpack.c.b16 %v876, %v872
    %v1157 = vpack.c.b16 %v877, %v873
    %v1158 = vpack.c.b16 %v878, %v874
    %v1159 = vpack.c.b16 %v883, %v879
    %v1160 = vpack.c.b16 %v884, %v880
    %v1161 = vpack.c.b16 %v885, %v881
    %v1162 = vpack.c.b16 %v886, %v882
    %v1163 = vpack.c.b16 %v891, %v887
    %v1164 = vpack.c.b16 %v892, %v888
    %v1165 = vpack.c.b16 %v893, %v889
    %v1166 = vpack.c.b16 %v894, %v890
    %v1167 = vpack.c.b16 %v899, %v895
    %v1168 = vpack.c.b16 %v900, %v896
    %v1169 = vpack.c.b16 %v901, %v897
    %v1170 = vpack.c.b16 %v902, %v898
    %v1171 = vpack.c.b16 %v907, %v903
    %v1172 = vpack.c.b16 %v908, %v904
    %v1173 = vpack.c.b16 %v909, %v905
    %v1174 = vpack.c.b16 %v910, %v906
    %v1175 = vpack.c.b16 %v915, %v911
    %v1176 = vpack.c.b16 %v916, %v912
    %v1177 = vpack.c.b16 %v917, %v913
    %v1178 = vpack.c.b16 %v918, %v914
    %v1179 = vpack.c.b16 %v923, %v919
    %v1180 = vpack.c.b16 %v924, %v920
    %v1181 = vpack.c.b16 %v925, %v921
    %v1182 = vpack.c.b16 %v926, %v922
    %v1183 = vpack.c.b16 %v931, %v927
    %v1184 = vpack.c.b16 %v932, %v928
    %v1185 = vpack.c.b16 %v933, %v929
    %v1186 = vpack.c.b16 %v934, %v930
    %v1187 = vpack.c.b16 %v939, %v935
    %v1188 = vpack.c.b16 %v940, %v936
    %v1189 = vpack.c.b16 %v941, %v937
    %v1190 = vpack.c.b16 %v942, %v938
    %v1191 = vpack.c.b16 %v947, %v943
    %v1192 = vpack.c.b16 %v948, %v944
    %v1193 = vpack.c.b16 %v949, %v945
    %v1194 = vpack.c.b16 %v950, %v946
    %v1195 = vpack.c.b16 %v955, %v951
    %v1196 = vpack.c.b16 %v956, %v952
    %v1197 = vpack.c.b16 %v957, %v953
    %v1198 = vpack.c.b16 %v958, %v954
    %v1199 = vpack.c.b16 %v963, %v959
    %v1200 = vpack.c.b16 %v964, %v960
    %v1201 = vpack.c.b16 %v965, %v961
    %v1202 = vpack.c.b16 %v966, %v962
    %v1203 = vpack.c.b16 %v971, %v967
    %v1204 = vpack.c.b16 %v972, %v968
    %v1205 = vpack.c.b16 %v973, %v969
    %v1206 = vpack.c.b16 %v974, %v970
    %v1207 = vpack.c.b16 %v979, %v975
    %v1208 = vpack.c.b16 %v980, %v976
    %v1209 = vpack.c.b16 %v981, %v977
    %v1210 = vpack.c.b16 %v982, %v978
    %v1211 = vpack.c.b16 %v987, %v983
    %v1212 = vpack.c.b16 %v988, %v984
    %v1213 = vpack.c.b16 %v989, %v985
    %v1214 = vpack.c.b16 %v990, %v986
    %v1215 = vpack.c.b16 %v995, %v991
    %v1216 = vpack.c.b16 %v996, %v992
    %v1217 = vpack.c.b16 %v997, %v993
    %v1218 = vpack.c.b16 %v998, %v994
    %v1219 = vpack.c.b16 %v1003, %v999
    %v1220 = vpack.c.b16 %v1004, %v1000
    %v1221 = vpack.c.b16 %v1005, %v1001
    %v1222 = vpack.c.b16 %v1006, %v1002
    %v1223 = vpack.c.b16 %v1011, %v1007
    %v1224 = vpack.c.b16 %v1012, %v1008
    %v1225 = vpack.c.b16 %v1013, %v1009
    %v1226 = vpack.c.b16 %v1014, %v1010
    %v1227 = vpack.c.b16 %v1019, %v1015
    %v1228 = vpack.c.b16 %v1020, %v1016
    %v1229 = vpack.c.b16 %v1021, %v1017
    %v1230 = vpack.c.b16 %v1022, %v1018
    %v1231 = vpack.c.b16 %v1027, %v1023
    %v1232 = vpack.c.b16 %v1028, %v1024
    %v1233 = vpack.c.b16 %v1029, %v1025
    %v1234 = vpack.c.b16 %v1030, %v1026
    %v1235 = vpack.c.b16 %v1035, %v1031
    %v1236 = vpack.c.b16 %v1036, %v1032
    %v1237 = vpack.c.b16 %v1037, %v1033
    %v1238 = vpack.c.b16 %v1038, %v1034
    %v1239 = vpack.c.b16 %v1043, %v1039
    %v1240 = vpack.c.b16 %v1044, %v1040
    %v1241 = vpack.c.b16 %v1045, %v1041
    %v1242 = vpack.c.b16 %v1046, %v1042
    %v1243 = vpack.c.b16 %v1051, %v1047
    %v1244 = vpack.c.b16 %v1052, %v1048
    %v1245 = vpack.c.b16 %v1053, %v1049
    %v1246 = vpack.c.b16 %v1054, %v1050
    %1439 = vmatpush.bf16.msra.mxu0 %v1083
    %1440 = vmatpush.bf16.msra.mxu0 %v1079
    %1441 = vmatpush.bf16.msra.mxu0 %v1075
    %1442 = vmatpush.bf16.msra.mxu0 %v1071
    %1443 = vmatpush.bf16.msra.mxu0 %v1067
    %1444 = vmatpush.bf16.msra.mxu0 %v1063
    %1445 = vmatpush.bf16.msra.mxu0 %v1059
    %1446 = vmatpush.bf16.msra.mxu0 %v1055
    %1447 = vmatmul.bf16.gmra.mxu0 %v467
    %v1448 = vpop.f32.mrf.mxu0
    %v1449 = vadd.f32 0.0, %v1448
    %v1450 = vpop.f32.mrf.mxu0
    %v1451 = vadd.f32 0.0, %v1450
    %1452 = vdwg.mxu0
    %1453 = vmatpush.bf16.msra.mxu0 %v1115
    %1454 = vmatpush.bf16.msra.mxu0 %v1111
    %1455 = vmatpush.bf16.msra.mxu0 %v1107
    %1456 = vmatpush.bf16.msra.mxu0 %v1103
    %1457 = vmatpush.bf16.msra.mxu0 %v1099
    %1458 = vmatpush.bf16.msra.mxu0 %v1095
    %1459 = vmatpush.bf16.msra.mxu0 %v1091
    %1460 = vmatpush.bf16.msra.mxu0 %v1087
    %1461 = vmatmul.bf16.gmra.mxu0 %v468
    %v1462 = vpop.f32.mrf.mxu0
    %v1463 = vadd.f32 %v1449, %v1462
    %v1464 = vpop.f32.mrf.mxu0
    %v1465 = vadd.f32 %v1451, %v1464
    %1466 = vdwg.mxu0
    %1467 = vmatpush.bf16.msra.mxu0 %v1147
    %1468 = vmatpush.bf16.msra.mxu0 %v1143
    %1469 = vmatpush.bf16.msra.mxu0 %v1139
    %1470 = vmatpush.bf16.msra.mxu0 %v1135
    %1471 = vmatpush.bf16.msra.mxu0 %v1131
    %1472 = vmatpush.bf16.msra.mxu0 %v1127
    %1473 = vmatpush.bf16.msra.mxu0 %v1123
    %1474 = vmatpush.bf16.msra.mxu0 %v1119
    %1475 = vmatmul.bf16.gmra.mxu0 %v469
    %v1476 = vpop.f32.mrf.mxu0
    %v1477 = vadd.f32 %v1463, %v1476
    %v1478 = vpop.f32.mrf.mxu0
    %v1479 = vadd.f32 %v1465, %v1478
    %1480 = vdwg.mxu0
    %1481 = vmatpush.bf16.msra.mxu0 %v1179
    %1482 = vmatpush.bf16.msra.mxu0 %v1175
    %1483 = vmatpush.bf16.msra.mxu0 %v1171
    %1484 = vmatpush.bf16.msra.mxu0 %v1167
    %1485 = vmatpush.bf16.msra.mxu0 %v1163
    %1486 = vmatpush.bf16.msra.mxu0 %v1159
    %1487 = vmatpush.bf16.msra.mxu0 %v1155
    %1488 = vmatpush.bf16.msra.mxu0 %v1151
    %1489 = vmatmul.bf16.gmra.mxu0 %v470
    %v1490 = vpop.f32.mrf.mxu0
    %v1491 = vadd.f32 %v1477, %v1490
    %v1492 = vpop.f32.mrf.mxu0
    %v1493 = vadd.f32 %v1479, %v1492
    %1494 = vdwg.mxu0
    %1495 = vmatpush.bf16.msra.mxu0 %v1211
    %1496 = vmatpush.bf16.msra.mxu0 %v1207
    %1497 = vmatpush.bf16.msra.mxu0 %v1203
    %1498 = vmatpush.bf16.msra.mxu0 %v1199
    %1499 = vmatpush.bf16.msra.mxu0 %v1195
    %1500 = vmatpush.bf16.msra.mxu0 %v1191
    %1501 = vmatpush.bf16.msra.mxu0 %v1187
    %1502 = vmatpush.bf16.msra.mxu0 %v1183
    %1503 = vmatmul.bf16.gmra.mxu0 %v471
    %v1504 = vpop.f32.mrf.mxu0
    %v1505 = vadd.f32 %v1491, %v1504
    %v1506 = vpop.f32.mrf.mxu0
    %v1507 = vadd.f32 %v1493, %v1506
    %1508 = vdwg.mxu0
    %1509 = vmatpush.bf16.msra.mxu0 %v1243
    %1510 = vmatpush.bf16.msra.mxu0 %v1239
    %1511 = vmatpush.bf16.msra.mxu0 %v1235
    %1512 = vmatpush.bf16.msra.mxu0 %v1231
    %1513 = vmatpush.bf16.msra.mxu0 %v1227
    %1514 = vmatpush.bf16.msra.mxu0 %v1223
    %1515 = vmatpush.bf16.msra.mxu0 %v1219
    %1516 = vmatpush.bf16.msra.mxu0 %v1215
    %1517 = vmatmul.bf16.gmra.mxu0 %v472
    %v1518 = vpop.f32.mrf.mxu0
    %v1519 = vadd.f32 %v1505, %v1518
    %v1520 = vpop.f32.mrf.mxu0
    %v1521 = vadd.f32 %v1507, %v1520
    %1522 = vdwg.mxu0
    %1523 = vmatpush.bf16.msra.mxu0 %v1084
    %1524 = vmatpush.bf16.msra.mxu0 %v1080
    %1525 = vmatpush.bf16.msra.mxu0 %v1076
    %1526 = vmatpush.bf16.msra.mxu0 %v1072
    %1527 = vmatpush.bf16.msra.mxu0 %v1068
    %1528 = vmatpush.bf16.msra.mxu0 %v1064
    %1529 = vmatpush.bf16.msra.mxu0 %v1060
    %1530 = vmatpush.bf16.msra.mxu0 %v1056
    %1531 = vmatmul.bf16.gmra.mxu0 %v467
    %v1532 = vpop.f32.mrf.mxu0
    %v1533 = vadd.f32 0.0, %v1532
    %v1534 = vpop.f32.mrf.mxu0
    %v1535 = vadd.f32 0.0, %v1534
    %1536 = vdwg.mxu0
    %1537 = vmatpush.bf16.msra.mxu0 %v1116
    %1538 = vmatpush.bf16.msra.mxu0 %v1112
    %1539 = vmatpush.bf16.msra.mxu0 %v1108
    %1540 = vmatpush.bf16.msra.mxu0 %v1104
    %1541 = vmatpush.bf16.msra.mxu0 %v1100
    %1542 = vmatpush.bf16.msra.mxu0 %v1096
    %1543 = vmatpush.bf16.msra.mxu0 %v1092
    %1544 = vmatpush.bf16.msra.mxu0 %v1088
    %1545 = vmatmul.bf16.gmra.mxu0 %v468
    %v1546 = vpop.f32.mrf.mxu0
    %v1547 = vadd.f32 %v1533, %v1546
    %v1548 = vpop.f32.mrf.mxu0
    %v1549 = vadd.f32 %v1535, %v1548
    %1550 = vdwg.mxu0
    %1551 = vmatpush.bf16.msra.mxu0 %v1148
    %1552 = vmatpush.bf16.msra.mxu0 %v1144
    %1553 = vmatpush.bf16.msra.mxu0 %v1140
    %1554 = vmatpush.bf16.msra.mxu0 %v1136
    %1555 = vmatpush.bf16.msra.mxu0 %v1132
    %1556 = vmatpush.bf16.msra.mxu0 %v1128
    %1557 = vmatpush.bf16.msra.mxu0 %v1124
    %1558 = vmatpush.bf16.msra.mxu0 %v1120
    %1559 = vmatmul.bf16.gmra.mxu0 %v469
    %v1560 = vpop.f32.mrf.mxu0
    %v1561 = vadd.f32 %v1547, %v1560
    %v1562 = vpop.f32.mrf.mxu0
    %v1563 = vadd.f32 %v1549, %v1562
    %1564 = vdwg.mxu0
    %1565 = vmatpush.bf16.msra.mxu0 %v1180
    %1566 = vmatpush.bf16.msra.mxu0 %v1176
    %1567 = vmatpush.bf16.msra.mxu0 %v1172
    %1568 = vmatpush.bf16.msra.mxu0 %v1168
    %1569 = vmatpush.bf16.msra.mxu0 %v1164
    %1570 = vmatpush.bf16.msra.mxu0 %v1160
    %1571 = vmatpush.bf16.msra.mxu0 %v1156
    %1572 = vmatpush.bf16.msra.mxu0 %v1152
    %1573 = vmatmul.bf16.gmra.mxu0 %v470
    %v1574 = vpop.f32.mrf.mxu0
    %v1575 = vadd.f32 %v1561, %v1574
    %v1576 = vpop.f32.mrf.mxu0
    %v1577 = vadd.f32 %v1563, %v1576
    %1578 = vdwg.mxu0
    %1579 = vmatpush.bf16.msra.mxu0 %v1212
    %1580 = vmatpush.bf16.msra.mxu0 %v1208
    %1581 = vmatpush.bf16.msra.mxu0 %v1204
    %1582 = vmatpush.bf16.msra.mxu0 %v1200
    %1583 = vmatpush.bf16.msra.mxu0 %v1196
    %1584 = vmatpush.bf16.msra.mxu0 %v1192
    %1585 = vmatpush.bf16.msra.mxu0 %v1188
    %1586 = vmatpush.bf16.msra.mxu0 %v1184
    %1587 = vmatmul.bf16.gmra.mxu0 %v471
    %v1588 = vpop.f32.mrf.mxu0
    %v1589 = vadd.f32 %v1575, %v1588
    %v1590 = vpop.f32.mrf.mxu0
    %v1591 = vadd.f32 %v1577, %v1590
    %1592 = vdwg.mxu0
    %1593 = vmatpush.bf16.msra.mxu0 %v1244
    %1594 = vmatpush.bf16.msra.mxu0 %v1240
    %1595 = vmatpush.bf16.msra.mxu0 %v1236
    %1596 = vmatpush.bf16.msra.mxu0 %v1232
    %1597 = vmatpush.bf16.msra.mxu0 %v1228
    %1598 = vmatpush.bf16.msra.mxu0 %v1224
    %1599 = vmatpush.bf16.msra.mxu0 %v1220
    %1600 = vmatpush.bf16.msra.mxu0 %v1216
    %1601 = vmatmul.bf16.gmra.mxu0 %v472
    %v1602 = vpop.f32.mrf.mxu0
    %v1603 = vadd.f32 %v1589, %v1602
    %v1604 = vpop.f32.mrf.mxu0
    %v1605 = vadd.f32 %v1591, %v1604
    %1606 = vdwg.mxu0
    %1607 = vmatpush.bf16.msra.mxu0 %v1085
    %1608 = vmatpush.bf16.msra.mxu0 %v1081
    %1609 = vmatpush.bf16.msra.mxu0 %v1077
    %1610 = vmatpush.bf16.msra.mxu0 %v1073
    %1611 = vmatpush.bf16.msra.mxu0 %v1069
    %1612 = vmatpush.bf16.msra.mxu0 %v1065
    %1613 = vmatpush.bf16.msra.mxu0 %v1061
    %1614 = vmatpush.bf16.msra.mxu0 %v1057
    %1615 = vmatmul.bf16.gmra.mxu0 %v467
    %v1616 = vpop.f32.mrf.mxu0
    %v1617 = vadd.f32 0.0, %v1616
    %v1618 = vpop.f32.mrf.mxu0
    %v1619 = vadd.f32 0.0, %v1618
    %1620 = vdwg.mxu0
    %1621 = vmatpush.bf16.msra.mxu0 %v1117
    %1622 = vmatpush.bf16.msra.mxu0 %v1113
    %1623 = vmatpush.bf16.msra.mxu0 %v1109
    %1624 = vmatpush.bf16.msra.mxu0 %v1105
    %1625 = vmatpush.bf16.msra.mxu0 %v1101
    %1626 = vmatpush.bf16.msra.mxu0 %v1097
    %1627 = vmatpush.bf16.msra.mxu0 %v1093
    %1628 = vmatpush.bf16.msra.mxu0 %v1089
    %1629 = vmatmul.bf16.gmra.mxu0 %v468
    %v1630 = vpop.f32.mrf.mxu0
    %v1631 = vadd.f32 %v1617, %v1630
    %v1632 = vpop.f32.mrf.mxu0
    %v1633 = vadd.f32 %v1619, %v1632
    %1634 = vdwg.mxu0
    %1635 = vmatpush.bf16.msra.mxu0 %v1149
    %1636 = vmatpush.bf16.msra.mxu0 %v1145
    %1637 = vmatpush.bf16.msra.mxu0 %v1141
    %1638 = vmatpush.bf16.msra.mxu0 %v1137
    %1639 = vmatpush.bf16.msra.mxu0 %v1133
    %1640 = vmatpush.bf16.msra.mxu0 %v1129
    %1641 = vmatpush.bf16.msra.mxu0 %v1125
    %1642 = vmatpush.bf16.msra.mxu0 %v1121
    %1643 = vmatmul.bf16.gmra.mxu0 %v469
    %v1644 = vpop.f32.mrf.mxu0
    %v1645 = vadd.f32 %v1631, %v1644
    %v1646 = vpop.f32.mrf.mxu0
    %v1647 = vadd.f32 %v1633, %v1646
    %1648 = vdwg.mxu0
    %1649 = vmatpush.bf16.msra.mxu0 %v1181
    %1650 = vmatpush.bf16.msra.mxu0 %v1177
    %1651 = vmatpush.bf16.msra.mxu0 %v1173
    %1652 = vmatpush.bf16.msra.mxu0 %v1169
    %1653 = vmatpush.bf16.msra.mxu0 %v1165
    %1654 = vmatpush.bf16.msra.mxu0 %v1161
    %1655 = vmatpush.bf16.msra.mxu0 %v1157
    %1656 = vmatpush.bf16.msra.mxu0 %v1153
    %1657 = vmatmul.bf16.gmra.mxu0 %v470
    %v1658 = vpop.f32.mrf.mxu0
    %v1659 = vadd.f32 %v1645, %v1658
    %v1660 = vpop.f32.mrf.mxu0
    %v1661 = vadd.f32 %v1647, %v1660
    %1662 = vdwg.mxu0
    %1663 = vmatpush.bf16.msra.mxu0 %v1213
    %1664 = vmatpush.bf16.msra.mxu0 %v1209
    %1665 = vmatpush.bf16.msra.mxu0 %v1205
    %1666 = vmatpush.bf16.msra.mxu0 %v1201
    %1667 = vmatpush.bf16.msra.mxu0 %v1197
    %1668 = vmatpush.bf16.msra.mxu0 %v1193
    %1669 = vmatpush.bf16.msra.mxu0 %v1189
    %1670 = vmatpush.bf16.msra.mxu0 %v1185
    %1671 = vmatmul.bf16.gmra.mxu0 %v471
    %v1672 = vpop.f32.mrf.mxu0
    %v1673 = vadd.f32 %v1659, %v1672
    %v1674 = vpop.f32.mrf.mxu0
    %v1675 = vadd.f32 %v1661, %v1674
    %1676 = vdwg.mxu0
    %1677 = vmatpush.bf16.msra.mxu0 %v1245
    %1678 = vmatpush.bf16.msra.mxu0 %v1241
    %1679 = vmatpush.bf16.msra.mxu0 %v1237
    %1680 = vmatpush.bf16.msra.mxu0 %v1233
    %1681 = vmatpush.bf16.msra.mxu0 %v1229
    %1682 = vmatpush.bf16.msra.mxu0 %v1225
    %1683 = vmatpush.bf16.msra.mxu0 %v1221
    %1684 = vmatpush.bf16.msra.mxu0 %v1217
    %1685 = vmatmul.bf16.gmra.mxu0 %v472
    %v1686 = vpop.f32.mrf.mxu0
    %v1687 = vadd.f32 %v1673, %v1686
    %v1688 = vpop.f32.mrf.mxu0
    %v1689 = vadd.f32 %v1675, %v1688
    %1690 = vdwg.mxu0
    %1691 = vmatpush.bf16.msra.mxu0 %v1086
    %1692 = vmatpush.bf16.msra.mxu0 %v1082
    %1693 = vmatpush.bf16.msra.mxu0 %v1078
    %1694 = vmatpush.bf16.msra.mxu0 %v1074
    %1695 = vmatpush.bf16.msra.mxu0 %v1070
    %1696 = vmatpush.bf16.msra.mxu0 %v1066
    %1697 = vmatpush.bf16.msra.mxu0 %v1062
    %1698 = vmatpush.bf16.msra.mxu0 %v1058
    %1699 = vmatmul.bf16.gmra.mxu0 %v467
    %v1700 = vpop.f32.mrf.mxu0
    %v1701 = vadd.f32 0.0, %v1700
    %v1702 = vpop.f32.mrf.mxu0
    %v1703 = vadd.f32 0.0, %v1702
    %1704 = vdwg.mxu0
    %1705 = vmatpush.bf16.msra.mxu0 %v1118
    %1706 = vmatpush.bf16.msra.mxu0 %v1114
    %1707 = vmatpush.bf16.msra.mxu0 %v1110
    %1708 = vmatpush.bf16.msra.mxu0 %v1106
    %1709 = vmatpush.bf16.msra.mxu0 %v1102
    %1710 = vmatpush.bf16.msra.mxu0 %v1098
    %1711 = vmatpush.bf16.msra.mxu0 %v1094
    %1712 = vmatpush.bf16.msra.mxu0 %v1090
    %1713 = vmatmul.bf16.gmra.mxu0 %v468
    %v1714 = vpop.f32.mrf.mxu0
    %v1715 = vadd.f32 %v1701, %v1714
    %v1716 = vpop.f32.mrf.mxu0
    %v1717 = vadd.f32 %v1703, %v1716
    %1718 = vdwg.mxu0
    %1719 = vmatpush.bf16.msra.mxu0 %v1150
    %1720 = vmatpush.bf16.msra.mxu0 %v1146
    %1721 = vmatpush.bf16.msra.mxu0 %v1142
    %1722 = vmatpush.bf16.msra.mxu0 %v1138
    %1723 = vmatpush.bf16.msra.mxu0 %v1134
    %1724 = vmatpush.bf16.msra.mxu0 %v1130
    %1725 = vmatpush.bf16.msra.mxu0 %v1126
    %1726 = vmatpush.bf16.msra.mxu0 %v1122
    %1727 = vmatmul.bf16.gmra.mxu0 %v469
    %v1728 = vpop.f32.mrf.mxu0
    %v1729 = vadd.f32 %v1715, %v1728
    %v1730 = vpop.f32.mrf.mxu0
    %v1731 = vadd.f32 %v1717, %v1730
    %1732 = vdwg.mxu0
    %1733 = vmatpush.bf16.msra.mxu0 %v1182
    %1734 = vmatpush.bf16.msra.mxu0 %v1178
    %1735 = vmatpush.bf16.msra.mxu0 %v1174
    %1736 = vmatpush.bf16.msra.mxu0 %v1170
    %1737 = vmatpush.bf16.msra.mxu0 %v1166
    %1738 = vmatpush.bf16.msra.mxu0 %v1162
    %1739 = vmatpush.bf16.msra.mxu0 %v1158
    %1740 = vmatpush.bf16.msra.mxu0 %v1154
    %1741 = vmatmul.bf16.gmra.mxu0 %v470
    %v1742 = vpop.f32.mrf.mxu0
    %v1743 = vadd.f32 %v1729, %v1742
    %v1744 = vpop.f32.mrf.mxu0
    %v1745 = vadd.f32 %v1731, %v1744
    %1746 = vdwg.mxu0
    %1747 = vmatpush.bf16.msra.mxu0 %v1214
    %1748 = vmatpush.bf16.msra.mxu0 %v1210
    %1749 = vmatpush.bf16.msra.mxu0 %v1206
    %1750 = vmatpush.bf16.msra.mxu0 %v1202
    %1751 = vmatpush.bf16.msra.mxu0 %v1198
    %1752 = vmatpush.bf16.msra.mxu0 %v1194
    %1753 = vmatpush.bf16.msra.mxu0 %v1190
    %1754 = vmatpush.bf16.msra.mxu0 %v1186
    %1755 = vmatmul.bf16.gmra.mxu0 %v471
    %v1756 = vpop.f32.mrf.mxu0
    %v1757 = vadd.f32 %v1743, %v1756
    %v1758 = vpop.f32.mrf.mxu0
    %v1759 = vadd.f32 %v1745, %v1758
    %1760 = vdwg.mxu0
    %1761 = vmatpush.bf16.msra.mxu0 %v1246
    %1762 = vmatpush.bf16.msra.mxu0 %v1242
    %1763 = vmatpush.bf16.msra.mxu0 %v1238
    %1764 = vmatpush.bf16.msra.mxu0 %v1234
    %1765 = vmatpush.bf16.msra.mxu0 %v1230
    %1766 = vmatpush.bf16.msra.mxu0 %v1226
    %1767 = vmatpush.bf16.msra.mxu0 %v1222
    %1768 = vmatpush.bf16.msra.mxu0 %v1218
    %1769 = vmatmul.bf16.gmra.mxu0 %v472
    %v1770 = vpop.f32.mrf.mxu0
    %v1771 = vadd.f32 %v1757, %v1770
    %v1772 = vpop.f32.mrf.mxu0
    %v1773 = vadd.f32 %v1759, %v1772
    %1774 = vdwg.mxu0
    %v1779 = vunpack.c.l.b16 %v119
    %v1780 = vunpack.c.h.b16 %v119
    %v1781 = vunpack.c.l.b16 %v120
    %v1782 = vunpack.c.h.b16 %v120
    %v1783 = vunpack.c.l.b16 %v121
    %v1784 = vunpack.c.h.b16 %v121
    %v1785 = vunpack.c.l.b16 %v122
    %v1786 = vunpack.c.h.b16 %v122
    %v1787 = vpack.c.b16 %v1783, %v1779
    %v1788 = vpack.c.b16 %v1784, %v1780
    %v1789 = vpack.c.b16 %v1785, %v1781
    %v1790 = vpack.c.b16 %v1786, %v1782
    %v1923 = vunpack.c.l.b16 %v123
    %v1924 = vunpack.c.h.b16 %v123
    %v1925 = vunpack.c.l.b16 %v124
    %v1926 = vunpack.c.h.b16 %v124
    %v1927 = vunpack.c.l.b16 %v125
    %v1928 = vunpack.c.h.b16 %v125
    %v1929 = vunpack.c.l.b16 %v126
    %v1930 = vunpack.c.h.b16 %v126
    %v1931 = vunpack.c.l.b16 %v127
    %v1932 = vunpack.c.h.b16 %v127
    %v1933 = vunpack.c.l.b16 %v128
    %v1934 = vunpack.c.h.b16 %v128
    %v1935 = vunpack.c.l.b16 %v129
    %v1936 = vunpack.c.h.b16 %v129
    %v1937 = vunpack.c.l.b16 %v130
    %v1938 = vunpack.c.h.b16 %v130
    %v1939 = vunpack.c.l.b16 %v131
    %v1940 = vunpack.c.h.b16 %v131
    %v1941 = vunpack.c.l.b16 %v132
    %v1942 = vunpack.c.h.b16 %v132
    %v1943 = vunpack.c.l.b16 %v133
    %v1944 = vunpack.c.h.b16 %v133
    %v1945 = vunpack.c.l.b16 %v134
    %v1946 = vunpack.c.h.b16 %v134
    %v1947 = vunpack.c.l.b16 %v135
    %v1948 = vunpack.c.h.b16 %v135
    %v1949 = vunpack.c.l.b16 %v136
    %v1950 = vunpack.c.h.b16 %v136
    %v1951 = vunpack.c.l.b16 %v137
    %v1952 = vunpack.c.h.b16 %v137
    %v1953 = vunpack.c.l.b16 %v138
    %v1954 = vunpack.c.h.b16 %v138
    %v1955 = vunpack.c.l.b16 %v139
    %v1956 = vunpack.c.h.b16 %v139
    %v1957 = vunpack.c.l.b16 %v140
    %v1958 = vunpack.c.h.b16 %v140
    %v1959 = vunpack.c.l.b16 %v141
    %v1960 = vunpack.c.h.b16 %v141
    %v1961 = vunpack.c.l.b16 %v142
    %v1962 = vunpack.c.h.b16 %v142
    %v1963 = vunpack.c.l.b16 %v143
    %v1964 = vunpack.c.h.b16 %v143
    %v1965 = vunpack.c.l.b16 %v144
    %v1966 = vunpack.c.h.b16 %v144
    %v1967 = vunpack.c.l.b16 %v145
    %v1968 = vunpack.c.h.b16 %v145
    %v1969 = vunpack.c.l.b16 %v146
    %v1970 = vunpack.c.h.b16 %v146
    %v1971 = vunpack.c.l.b16 %v147
    %v1972 = vunpack.c.h.b16 %v147
    %v1973 = vunpack.c.l.b16 %v148
    %v1974 = vunpack.c.h.b16 %v148
    %v1975 = vunpack.c.l.b16 %v149
    %v1976 = vunpack.c.h.b16 %v149
    %v1977 = vunpack.c.l.b16 %v150
    %v1978 = vunpack.c.h.b16 %v150
    %v1979 = vunpack.c.l.b16 %v151
    %v1980 = vunpack.c.h.b16 %v151
    %v1981 = vunpack.c.l.b16 %v152
    %v1982 = vunpack.c.h.b16 %v152
    %v1983 = vunpack.c.l.b16 %v153
    %v1984 = vunpack.c.h.b16 %v153
    %v1985 = vunpack.c.l.b16 %v154
    %v1986 = vunpack.c.h.b16 %v154
    %v1987 = vunpack.c.l.b16 %v155
    %v1988 = vunpack.c.h.b16 %v155
    %v1989 = vunpack.c.l.b16 %v156
    %v1990 = vunpack.c.h.b16 %v156
    %v1991 = vunpack.c.l.b16 %v157
    %v1992 = vunpack.c.h.b16 %v157
    %v1993 = vunpack.c.l.b16 %v158
    %v1994 = vunpack.c.h.b16 %v158
    %v1995 = vunpack.c.l.b16 %v159
    %v1996 = vunpack.c.h.b16 %v159
    %v1997 = vunpack.c.l.b16 %v160
    %v1998 = vunpack.c.h.b16 %v160
    %v1999 = vunpack.c.l.b16 %v161
    %v2000 = vunpack.c.h.b16 %v161
    %v2001 = vunpack.c.l.b16 %v162
    %v2002 = vunpack.c.h.b16 %v162
    %v2003 = vunpack.c.l.b16 %v163
    %v2004 = vunpack.c.h.b16 %v163
    %v2005 = vunpack.c.l.b16 %v164
    %v2006 = vunpack.c.h.b16 %v164
    %v2007 = vunpack.c.l.b16 %v165
    %v2008 = vunpack.c.h.b16 %v165
    %v2009 = vunpack.c.l.b16 %v166
    %v2010 = vunpack.c.h.b16 %v166
    %v2011 = vunpack.c.l.b16 %v167
    %v2012 = vunpack.c.h.b16 %v167
    %v2013 = vunpack.c.l.b16 %v168
    %v2014 = vunpack.c.h.b16 %v168
    %v2015 = vunpack.c.l.b16 %v169
    %v2016 = vunpack.c.h.b16 %v169
    %v2017 = vunpack.c.l.b16 %v170
    %v2018 = vunpack.c.h.b16 %v170
    %v2019 = vunpack.c.l.b16 %v171
    %v2020 = vunpack.c.h.b16 %v171
    %v2021 = vunpack.c.l.b16 %v172
    %v2022 = vunpack.c.h.b16 %v172
    %v2023 = vunpack.c.l.b16 %v173
    %v2024 = vunpack.c.h.b16 %v173
    %v2025 = vunpack.c.l.b16 %v174
    %v2026 = vunpack.c.h.b16 %v174
    %v2027 = vunpack.c.l.b16 %v175
    %v2028 = vunpack.c.h.b16 %v175
    %v2029 = vunpack.c.l.b16 %v176
    %v2030 = vunpack.c.h.b16 %v176
    %v2031 = vunpack.c.l.b16 %v177
    %v2032 = vunpack.c.h.b16 %v177
    %v2033 = vunpack.c.l.b16 %v178
    %v2034 = vunpack.c.h.b16 %v178
    %v2035 = vunpack.c.l.b16 %v179
    %v2036 = vunpack.c.h.b16 %v179
    %v2037 = vunpack.c.l.b16 %v180
    %v2038 = vunpack.c.h.b16 %v180
    %v2039 = vunpack.c.l.b16 %v181
    %v2040 = vunpack.c.h.b16 %v181
    %v2041 = vunpack.c.l.b16 %v182
    %v2042 = vunpack.c.h.b16 %v182
    %v2043 = vunpack.c.l.b16 %v183
    %v2044 = vunpack.c.h.b16 %v183
    %v2045 = vunpack.c.l.b16 %v184
    %v2046 = vunpack.c.h.b16 %v184
    %v2047 = vunpack.c.l.b16 %v185
    %v2048 = vunpack.c.h.b16 %v185
    %v2049 = vunpack.c.l.b16 %v186
    %v2050 = vunpack.c.h.b16 %v186
    %v2051 = vunpack.c.l.b16 %v187
    %v2052 = vunpack.c.h.b16 %v187
    %v2053 = vunpack.c.l.b16 %v188
    %v2054 = vunpack.c.h.b16 %v188
    %v2055 = vunpack.c.l.b16 %v189
    %v2056 = vunpack.c.h.b16 %v189
    %v2057 = vunpack.c.l.b16 %v190
    %v2058 = vunpack.c.h.b16 %v190
    %v2059 = vunpack.c.l.b16 %v191
    %v2060 = vunpack.c.h.b16 %v191
    %v2061 = vunpack.c.l.b16 %v192
    %v2062 = vunpack.c.h.b16 %v192
    %v2063 = vunpack.c.l.b16 %v193
    %v2064 = vunpack.c.h.b16 %v193
    %v2065 = vunpack.c.l.b16 %v194
    %v2066 = vunpack.c.h.b16 %v194
    %v2067 = vunpack.c.l.b16 %v195
    %v2068 = vunpack.c.h.b16 %v195
    %v2069 = vunpack.c.l.b16 %v196
    %v2070 = vunpack.c.h.b16 %v196
    %v2071 = vunpack.c.l.b16 %v197
    %v2072 = vunpack.c.h.b16 %v197
    %v2073 = vunpack.c.l.b16 %v198
    %v2074 = vunpack.c.h.b16 %v198
    %v2075 = vunpack.c.l.b16 %v199
    %v2076 = vunpack.c.h.b16 %v199
    %v2077 = vunpack.c.l.b16 %v200
    %v2078 = vunpack.c.h.b16 %v200
    %v2079 = vunpack.c.l.b16 %v201
    %v2080 = vunpack.c.h.b16 %v201
    %v2081 = vunpack.c.l.b16 %v202
    %v2082 = vunpack.c.h.b16 %v202
    %v2083 = vunpack.c.l.b16 %v203
    %v2084 = vunpack.c.h.b16 %v203
    %v2085 = vunpack.c.l.b16 %v204
    %v2086 = vunpack.c.h.b16 %v204
    %v2087 = vunpack.c.l.b16 %v205
    %v2088 = vunpack.c.h.b16 %v205
    %v2089 = vunpack.c.l.b16 %v206
    %v2090 = vunpack.c.h.b16 %v206
    %v2091 = vunpack.c.l.b16 %v207
    %v2092 = vunpack.c.h.b16 %v207
    %v2093 = vunpack.c.l.b16 %v208
    %v2094 = vunpack.c.h.b16 %v208
    %v2095 = vunpack.c.l.b16 %v209
    %v2096 = vunpack.c.h.b16 %v209
    %v2097 = vunpack.c.l.b16 %v210
    %v2098 = vunpack.c.h.b16 %v210
    %v2099 = vunpack.c.l.b16 %v211
    %v2100 = vunpack.c.h.b16 %v211
    %v2101 = vunpack.c.l.b16 %v212
    %v2102 = vunpack.c.h.b16 %v212
    %v2103 = vunpack.c.l.b16 %v213
    %v2104 = vunpack.c.h.b16 %v213
    %v2105 = vunpack.c.l.b16 %v214
    %v2106 = vunpack.c.h.b16 %v214
    %v2107 = vunpack.c.l.b16 %v215
    %v2108 = vunpack.c.h.b16 %v215
    %v2109 = vunpack.c.l.b16 %v216
    %v2110 = vunpack.c.h.b16 %v216
    %v2111 = vunpack.c.l.b16 %v217
    %v2112 = vunpack.c.h.b16 %v217
    %v2113 = vunpack.c.l.b16 %v218
    %v2114 = vunpack.c.h.b16 %v218
    %v2115 = vunpack.c.l.b16 %v219
    %v2116 = vunpack.c.h.b16 %v219
    %v2117 = vunpack.c.l.b16 %v220
    %v2118 = vunpack.c.h.b16 %v220
    %v2119 = vunpack.c.l.b16 %v221
    %v2120 = vunpack.c.h.b16 %v221
    %v2121 = vunpack.c.l.b16 %v222
    %v2122 = vunpack.c.h.b16 %v222
    %v2123 = vunpack.c.l.b16 %v223
    %v2124 = vunpack.c.h.b16 %v223
    %v2125 = vunpack.c.l.b16 %v224
    %v2126 = vunpack.c.h.b16 %v224
    %v2127 = vunpack.c.l.b16 %v225
    %v2128 = vunpack.c.h.b16 %v225
    %v2129 = vunpack.c.l.b16 %v226
    %v2130 = vunpack.c.h.b16 %v226
    %v2131 = vunpack.c.l.b16 %v227
    %v2132 = vunpack.c.h.b16 %v227
    %v2133 = vunpack.c.l.b16 %v228
    %v2134 = vunpack.c.h.b16 %v228
    %v2135 = vunpack.c.l.b16 %v229
    %v2136 = vunpack.c.h.b16 %v229
    %v2137 = vunpack.c.l.b16 %v230
    %v2138 = vunpack.c.h.b16 %v230
    %v2139 = vunpack.c.l.b16 %v231
    %v2140 = vunpack.c.h.b16 %v231
    %v2141 = vunpack.c.l.b16 %v232
    %v2142 = vunpack.c.h.b16 %v232
    %v2143 = vunpack.c.l.b16 %v233
    %v2144 = vunpack.c.h.b16 %v233
    %v2145 = vunpack.c.l.b16 %v234
    %v2146 = vunpack.c.h.b16 %v234
    %v2147 = vunpack.c.l.b16 %v235
    %v2148 = vunpack.c.h.b16 %v235
    %v2149 = vunpack.c.l.b16 %v236
    %v2150 = vunpack.c.h.b16 %v236
    %v2151 = vunpack.c.l.b16 %v237
    %v2152 = vunpack.c.h.b16 %v237
    %v2153 = vunpack.c.l.b16 %v238
    %v2154 = vunpack.c.h.b16 %v238
    %v2155 = vunpack.c.l.b16 %v239
    %v2156 = vunpack.c.h.b16 %v239
    %v2157 = vunpack.c.l.b16 %v240
    %v2158 = vunpack.c.h.b16 %v240
    %v2159 = vunpack.c.l.b16 %v241
    %v2160 = vunpack.c.h.b16 %v241
    %v2161 = vunpack.c.l.b16 %v242
    %v2162 = vunpack.c.h.b16 %v242
    %v2163 = vunpack.c.l.b16 %v243
    %v2164 = vunpack.c.h.b16 %v243
    %v2165 = vunpack.c.l.b16 %v244
    %v2166 = vunpack.c.h.b16 %v244
    %v2167 = vunpack.c.l.b16 %v245
    %v2168 = vunpack.c.h.b16 %v245
    %v2169 = vunpack.c.l.b16 %v246
    %v2170 = vunpack.c.h.b16 %v246
    %v2171 = vunpack.c.l.b16 %v247
    %v2172 = vunpack.c.h.b16 %v247
    %v2173 = vunpack.c.l.b16 %v248
    %v2174 = vunpack.c.h.b16 %v248
    %v2175 = vunpack.c.l.b16 %v249
    %v2176 = vunpack.c.h.b16 %v249
    %v2177 = vunpack.c.l.b16 %v250
    %v2178 = vunpack.c.h.b16 %v250
    %v2179 = vpack.c.b16 %v1927, %v1923
    %v2180 = vpack.c.b16 %v1928, %v1924
    %v2181 = vpack.c.b16 %v1929, %v1925
    %v2182 = vpack.c.b16 %v1930, %v1926
    %v2183 = vpack.c.b16 %v1935, %v1931
    %v2184 = vpack.c.b16 %v1936, %v1932
    %v2185 = vpack.c.b16 %v1937, %v1933
    %v2186 = vpack.c.b16 %v1938, %v1934
    %v2187 = vpack.c.b16 %v1943, %v1939
    %v2188 = vpack.c.b16 %v1944, %v1940
    %v2189 = vpack.c.b16 %v1945, %v1941
    %v2190 = vpack.c.b16 %v1946, %v1942
    %v2191 = vpack.c.b16 %v1951, %v1947
    %v2192 = vpack.c.b16 %v1952, %v1948
    %v2193 = vpack.c.b16 %v1953, %v1949
    %v2194 = vpack.c.b16 %v1954, %v1950
    %v2195 = vpack.c.b16 %v1959, %v1955
    %v2196 = vpack.c.b16 %v1960, %v1956
    %v2197 = vpack.c.b16 %v1961, %v1957
    %v2198 = vpack.c.b16 %v1962, %v1958
    %v2199 = vpack.c.b16 %v1967, %v1963
    %v2200 = vpack.c.b16 %v1968, %v1964
    %v2201 = vpack.c.b16 %v1969, %v1965
    %v2202 = vpack.c.b16 %v1970, %v1966
    %v2203 = vpack.c.b16 %v1975, %v1971
    %v2204 = vpack.c.b16 %v1976, %v1972
    %v2205 = vpack.c.b16 %v1977, %v1973
    %v2206 = vpack.c.b16 %v1978, %v1974
    %v2207 = vpack.c.b16 %v1983, %v1979
    %v2208 = vpack.c.b16 %v1984, %v1980
    %v2209 = vpack.c.b16 %v1985, %v1981
    %v2210 = vpack.c.b16 %v1986, %v1982
    %v2211 = vpack.c.b16 %v1991, %v1987
    %v2212 = vpack.c.b16 %v1992, %v1988
    %v2213 = vpack.c.b16 %v1993, %v1989
    %v2214 = vpack.c.b16 %v1994, %v1990
    %v2215 = vpack.c.b16 %v1999, %v1995
    %v2216 = vpack.c.b16 %v2000, %v1996
    %v2217 = vpack.c.b16 %v2001, %v1997
    %v2218 = vpack.c.b16 %v2002, %v1998
    %v2219 = vpack.c.b16 %v2007, %v2003
    %v2220 = vpack.c.b16 %v2008, %v2004
    %v2221 = vpack.c.b16 %v2009, %v2005
    %v2222 = vpack.c.b16 %v2010, %v2006
    %v2223 = vpack.c.b16 %v2015, %v2011
    %v2224 = vpack.c.b16 %v2016, %v2012
    %v2225 = vpack.c.b16 %v2017, %v2013
    %v2226 = vpack.c.b16 %v2018, %v2014
    %v2227 = vpack.c.b16 %v2023, %v2019
    %v2228 = vpack.c.b16 %v2024, %v2020
    %v2229 = vpack.c.b16 %v2025, %v2021
    %v2230 = vpack.c.b16 %v2026, %v2022
    %v2231 = vpack.c.b16 %v2031, %v2027
    %v2232 = vpack.c.b16 %v2032, %v2028
    %v2233 = vpack.c.b16 %v2033, %v2029
    %v2234 = vpack.c.b16 %v2034, %v2030
    %v2235 = vpack.c.b16 %v2039, %v2035
    %v2236 = vpack.c.b16 %v2040, %v2036
    %v2237 = vpack.c.b16 %v2041, %v2037
    %v2238 = vpack.c.b16 %v2042, %v2038
    %v2239 = vpack.c.b16 %v2047, %v2043
    %v2240 = vpack.c.b16 %v2048, %v2044
    %v2241 = vpack.c.b16 %v2049, %v2045
    %v2242 = vpack.c.b16 %v2050, %v2046
    %v2243 = vpack.c.b16 %v2055, %v2051
    %v2244 = vpack.c.b16 %v2056, %v2052
    %v2245 = vpack.c.b16 %v2057, %v2053
    %v2246 = vpack.c.b16 %v2058, %v2054
    %v2247 = vpack.c.b16 %v2063, %v2059
    %v2248 = vpack.c.b16 %v2064, %v2060
    %v2249 = vpack.c.b16 %v2065, %v2061
    %v2250 = vpack.c.b16 %v2066, %v2062
    %v2251 = vpack.c.b16 %v2071, %v2067
    %v2252 = vpack.c.b16 %v2072, %v2068
    %v2253 = vpack.c.b16 %v2073, %v2069
    %v2254 = vpack.c.b16 %v2074, %v2070
    %v2255 = vpack.c.b16 %v2079, %v2075
    %v2256 = vpack.c.b16 %v2080, %v2076
    %v2257 = vpack.c.b16 %v2081, %v2077
    %v2258 = vpack.c.b16 %v2082, %v2078
    %v2259 = vpack.c.b16 %v2087, %v2083
    %v2260 = vpack.c.b16 %v2088, %v2084
    %v2261 = vpack.c.b16 %v2089, %v2085
    %v2262 = vpack.c.b16 %v2090, %v2086
    %v2263 = vpack.c.b16 %v2095, %v2091
    %v2264 = vpack.c.b16 %v2096, %v2092
    %v2265 = vpack.c.b16 %v2097, %v2093
    %v2266 = vpack.c.b16 %v2098, %v2094
    %v2267 = vpack.c.b16 %v2103, %v2099
    %v2268 = vpack.c.b16 %v2104, %v2100
    %v2269 = vpack.c.b16 %v2105, %v2101
    %v2270 = vpack.c.b16 %v2106, %v2102
    %v2271 = vpack.c.b16 %v2111, %v2107
    %v2272 = vpack.c.b16 %v2112, %v2108
    %v2273 = vpack.c.b16 %v2113, %v2109
    %v2274 = vpack.c.b16 %v2114, %v2110
    %v2275 = vpack.c.b16 %v2119, %v2115
    %v2276 = vpack.c.b16 %v2120, %v2116
    %v2277 = vpack.c.b16 %v2121, %v2117
    %v2278 = vpack.c.b16 %v2122, %v2118
    %v2279 = vpack.c.b16 %v2127, %v2123
    %v2280 = vpack.c.b16 %v2128, %v2124
    %v2281 = vpack.c.b16 %v2129, %v2125
    %v2282 = vpack.c.b16 %v2130, %v2126
    %v2283 = vpack.c.b16 %v2135, %v2131
    %v2284 = vpack.c.b16 %v2136, %v2132
    %v2285 = vpack.c.b16 %v2137, %v2133
    %v2286 = vpack.c.b16 %v2138, %v2134
    %v2287 = vpack.c.b16 %v2143, %v2139
    %v2288 = vpack.c.b16 %v2144, %v2140
    %v2289 = vpack.c.b16 %v2145, %v2141
    %v2290 = vpack.c.b16 %v2146, %v2142
    %v2291 = vpack.c.b16 %v2151, %v2147
    %v2292 = vpack.c.b16 %v2152, %v2148
    %v2293 = vpack.c.b16 %v2153, %v2149
    %v2294 = vpack.c.b16 %v2154, %v2150
    %v2295 = vpack.c.b16 %v2159, %v2155
    %v2296 = vpack.c.b16 %v2160, %v2156
    %v2297 = vpack.c.b16 %v2161, %v2157
    %v2298 = vpack.c.b16 %v2162, %v2158
    %v2299 = vpack.c.b16 %v2167, %v2163
    %v2300 = vpack.c.b16 %v2168, %v2164
    %v2301 = vpack.c.b16 %v2169, %v2165
    %v2302 = vpack.c.b16 %v2170, %v2166
    %v2303 = vpack.c.b16 %v2175, %v2171
    %v2304 = vpack.c.b16 %v2176, %v2172
    %v2305 = vpack.c.b16 %v2177, %v2173
    %v2306 = vpack.c.b16 %v2178, %v2174
    %2435 = vmatpush.bf16.msra.mxu0 %v2207
    %2436 = vmatpush.bf16.msra.mxu0 %v2203
    %2437 = vmatpush.bf16.msra.mxu0 %v2199
    %2438 = vmatpush.bf16.msra.mxu0 %v2195
    %2439 = vmatpush.bf16.msra.mxu0 %v2191
    %2440 = vmatpush.bf16.msra.mxu0 %v2187
    %2441 = vmatpush.bf16.msra.mxu0 %v2183
    %2442 = vmatpush.bf16.msra.mxu0 %v2179
    %2443 = vmatmul.bf16.gmra.mxu0 %v1787
    %v2444 = vpop.f32.mrf.mxu0
    %v2445 = vadd.f32 %v1519, %v2444
    %v2446 = vpop.f32.mrf.mxu0
    %v2447 = vadd.f32 %v1521, %v2446
    %2448 = vdwg.mxu0
    %2449 = vmatpush.bf16.msra.mxu0 %v2239
    %2450 = vmatpush.bf16.msra.mxu0 %v2235
    %2451 = vmatpush.bf16.msra.mxu0 %v2231
    %2452 = vmatpush.bf16.msra.mxu0 %v2227
    %2453 = vmatpush.bf16.msra.mxu0 %v2223
    %2454 = vmatpush.bf16.msra.mxu0 %v2219
    %2455 = vmatpush.bf16.msra.mxu0 %v2215
    %2456 = vmatpush.bf16.msra.mxu0 %v2211
    %2457 = vmatmul.bf16.gmra.mxu0 %v1788
    %v2458 = vpop.f32.mrf.mxu0
    %v2459 = vadd.f32 %v2445, %v2458
    %v2460 = vpop.f32.mrf.mxu0
    %v2461 = vadd.f32 %v2447, %v2460
    %2462 = vdwg.mxu0
    %2463 = vmatpush.bf16.msra.mxu0 %v2271
    %2464 = vmatpush.bf16.msra.mxu0 %v2267
    %2465 = vmatpush.bf16.msra.mxu0 %v2263
    %2466 = vmatpush.bf16.msra.mxu0 %v2259
    %2467 = vmatpush.bf16.msra.mxu0 %v2255
    %2468 = vmatpush.bf16.msra.mxu0 %v2251
    %2469 = vmatpush.bf16.msra.mxu0 %v2247
    %2470 = vmatpush.bf16.msra.mxu0 %v2243
    %2471 = vmatmul.bf16.gmra.mxu0 %v1789
    %v2472 = vpop.f32.mrf.mxu0
    %v2473 = vadd.f32 %v2459, %v2472
    %v2474 = vpop.f32.mrf.mxu0
    %v2475 = vadd.f32 %v2461, %v2474
    %2476 = vdwg.mxu0
    %2477 = vmatpush.bf16.msra.mxu0 %v2303
    %2478 = vmatpush.bf16.msra.mxu0 %v2299
    %2479 = vmatpush.bf16.msra.mxu0 %v2295
    %2480 = vmatpush.bf16.msra.mxu0 %v2291
    %2481 = vmatpush.bf16.msra.mxu0 %v2287
    %2482 = vmatpush.bf16.msra.mxu0 %v2283
    %2483 = vmatpush.bf16.msra.mxu0 %v2279
    %2484 = vmatpush.bf16.msra.mxu0 %v2275
    %2485 = vmatmul.bf16.gmra.mxu0 %v1790
    %v2486 = vpop.f32.mrf.mxu0
    %v2487 = vadd.f32 %v2473, %v2486
    %v2488 = vpop.f32.mrf.mxu0
    %v2489 = vadd.f32 %v2475, %v2488
    %2490 = vdwg.mxu0
    %2491 = vmatpush.bf16.msra.mxu0 %v2208
    %2492 = vmatpush.bf16.msra.mxu0 %v2204
    %2493 = vmatpush.bf16.msra.mxu0 %v2200
    %2494 = vmatpush.bf16.msra.mxu0 %v2196
    %2495 = vmatpush.bf16.msra.mxu0 %v2192
    %2496 = vmatpush.bf16.msra.mxu0 %v2188
    %2497 = vmatpush.bf16.msra.mxu0 %v2184
    %2498 = vmatpush.bf16.msra.mxu0 %v2180
    %2499 = vmatmul.bf16.gmra.mxu0 %v1787
    %v2500 = vpop.f32.mrf.mxu0
    %v2501 = vadd.f32 %v1603, %v2500
    %v2502 = vpop.f32.mrf.mxu0
    %v2503 = vadd.f32 %v1605, %v2502
    %2504 = vdwg.mxu0
    %2505 = vmatpush.bf16.msra.mxu0 %v2240
    %2506 = vmatpush.bf16.msra.mxu0 %v2236
    %2507 = vmatpush.bf16.msra.mxu0 %v2232
    %2508 = vmatpush.bf16.msra.mxu0 %v2228
    %2509 = vmatpush.bf16.msra.mxu0 %v2224
    %2510 = vmatpush.bf16.msra.mxu0 %v2220
    %2511 = vmatpush.bf16.msra.mxu0 %v2216
    %2512 = vmatpush.bf16.msra.mxu0 %v2212
    %2513 = vmatmul.bf16.gmra.mxu0 %v1788
    %v2514 = vpop.f32.mrf.mxu0
    %v2515 = vadd.f32 %v2501, %v2514
    %v2516 = vpop.f32.mrf.mxu0
    %v2517 = vadd.f32 %v2503, %v2516
    %2518 = vdwg.mxu0
    %2519 = vmatpush.bf16.msra.mxu0 %v2272
    %2520 = vmatpush.bf16.msra.mxu0 %v2268
    %2521 = vmatpush.bf16.msra.mxu0 %v2264
    %2522 = vmatpush.bf16.msra.mxu0 %v2260
    %2523 = vmatpush.bf16.msra.mxu0 %v2256
    %2524 = vmatpush.bf16.msra.mxu0 %v2252
    %2525 = vmatpush.bf16.msra.mxu0 %v2248
    %2526 = vmatpush.bf16.msra.mxu0 %v2244
    %2527 = vmatmul.bf16.gmra.mxu0 %v1789
    %v2528 = vpop.f32.mrf.mxu0
    %v2529 = vadd.f32 %v2515, %v2528
    %v2530 = vpop.f32.mrf.mxu0
    %v2531 = vadd.f32 %v2517, %v2530
    %2532 = vdwg.mxu0
    %2533 = vmatpush.bf16.msra.mxu0 %v2304
    %2534 = vmatpush.bf16.msra.mxu0 %v2300
    %2535 = vmatpush.bf16.msra.mxu0 %v2296
    %2536 = vmatpush.bf16.msra.mxu0 %v2292
    %2537 = vmatpush.bf16.msra.mxu0 %v2288
    %2538 = vmatpush.bf16.msra.mxu0 %v2284
    %2539 = vmatpush.bf16.msra.mxu0 %v2280
    %2540 = vmatpush.bf16.msra.mxu0 %v2276
    %2541 = vmatmul.bf16.gmra.mxu0 %v1790
    %v2542 = vpop.f32.mrf.mxu0
    %v2543 = vadd.f32 %v2529, %v2542
    %v2544 = vpop.f32.mrf.mxu0
    %v2545 = vadd.f32 %v2531, %v2544
    %2546 = vdwg.mxu0
    %2547 = vmatpush.bf16.msra.mxu0 %v2209
    %2548 = vmatpush.bf16.msra.mxu0 %v2205
    %2549 = vmatpush.bf16.msra.mxu0 %v2201
    %2550 = vmatpush.bf16.msra.mxu0 %v2197
    %2551 = vmatpush.bf16.msra.mxu0 %v2193
    %2552 = vmatpush.bf16.msra.mxu0 %v2189
    %2553 = vmatpush.bf16.msra.mxu0 %v2185
    %2554 = vmatpush.bf16.msra.mxu0 %v2181
    %2555 = vmatmul.bf16.gmra.mxu0 %v1787
    %v2556 = vpop.f32.mrf.mxu0
    %v2557 = vadd.f32 %v1687, %v2556
    %v2558 = vpop.f32.mrf.mxu0
    %v2559 = vadd.f32 %v1689, %v2558
    %2560 = vdwg.mxu0
    %2561 = vmatpush.bf16.msra.mxu0 %v2241
    %2562 = vmatpush.bf16.msra.mxu0 %v2237
    %2563 = vmatpush.bf16.msra.mxu0 %v2233
    %2564 = vmatpush.bf16.msra.mxu0 %v2229
    %2565 = vmatpush.bf16.msra.mxu0 %v2225
    %2566 = vmatpush.bf16.msra.mxu0 %v2221
    %2567 = vmatpush.bf16.msra.mxu0 %v2217
    %2568 = vmatpush.bf16.msra.mxu0 %v2213
    %2569 = vmatmul.bf16.gmra.mxu0 %v1788
    %v2570 = vpop.f32.mrf.mxu0
    %v2571 = vadd.f32 %v2557, %v2570
    %v2572 = vpop.f32.mrf.mxu0
    %v2573 = vadd.f32 %v2559, %v2572
    %2574 = vdwg.mxu0
    %2575 = vmatpush.bf16.msra.mxu0 %v2273
    %2576 = vmatpush.bf16.msra.mxu0 %v2269
    %2577 = vmatpush.bf16.msra.mxu0 %v2265
    %2578 = vmatpush.bf16.msra.mxu0 %v2261
    %2579 = vmatpush.bf16.msra.mxu0 %v2257
    %2580 = vmatpush.bf16.msra.mxu0 %v2253
    %2581 = vmatpush.bf16.msra.mxu0 %v2249
    %2582 = vmatpush.bf16.msra.mxu0 %v2245
    %2583 = vmatmul.bf16.gmra.mxu0 %v1789
    %v2584 = vpop.f32.mrf.mxu0
    %v2585 = vadd.f32 %v2571, %v2584
    %v2586 = vpop.f32.mrf.mxu0
    %v2587 = vadd.f32 %v2573, %v2586
    %2588 = vdwg.mxu0
    %2589 = vmatpush.bf16.msra.mxu0 %v2305
    %2590 = vmatpush.bf16.msra.mxu0 %v2301
    %2591 = vmatpush.bf16.msra.mxu0 %v2297
    %2592 = vmatpush.bf16.msra.mxu0 %v2293
    %2593 = vmatpush.bf16.msra.mxu0 %v2289
    %2594 = vmatpush.bf16.msra.mxu0 %v2285
    %2595 = vmatpush.bf16.msra.mxu0 %v2281
    %2596 = vmatpush.bf16.msra.mxu0 %v2277
    %2597 = vmatmul.bf16.gmra.mxu0 %v1790
    %v2598 = vpop.f32.mrf.mxu0
    %v2599 = vadd.f32 %v2585, %v2598
    %v2600 = vpop.f32.mrf.mxu0
    %v2601 = vadd.f32 %v2587, %v2600
    %2602 = vdwg.mxu0
    %2603 = vmatpush.bf16.msra.mxu0 %v2210
    %2604 = vmatpush.bf16.msra.mxu0 %v2206
    %2605 = vmatpush.bf16.msra.mxu0 %v2202
    %2606 = vmatpush.bf16.msra.mxu0 %v2198
    %2607 = vmatpush.bf16.msra.mxu0 %v2194
    %2608 = vmatpush.bf16.msra.mxu0 %v2190
    %2609 = vmatpush.bf16.msra.mxu0 %v2186
    %2610 = vmatpush.bf16.msra.mxu0 %v2182
    %2611 = vmatmul.bf16.gmra.mxu0 %v1787
    %v2612 = vpop.f32.mrf.mxu0
    %v2613 = vadd.f32 %v1771, %v2612
    %v2614 = vpop.f32.mrf.mxu0
    %v2615 = vadd.f32 %v1773, %v2614
    %2616 = vdwg.mxu0
    %2617 = vmatpush.bf16.msra.mxu0 %v2242
    %2618 = vmatpush.bf16.msra.mxu0 %v2238
    %2619 = vmatpush.bf16.msra.mxu0 %v2234
    %2620 = vmatpush.bf16.msra.mxu0 %v2230
    %2621 = vmatpush.bf16.msra.mxu0 %v2226
    %2622 = vmatpush.bf16.msra.mxu0 %v2222
    %2623 = vmatpush.bf16.msra.mxu0 %v2218
    %2624 = vmatpush.bf16.msra.mxu0 %v2214
    %2625 = vmatmul.bf16.gmra.mxu0 %v1788
    %v2626 = vpop.f32.mrf.mxu0
    %v2627 = vadd.f32 %v2613, %v2626
    %v2628 = vpop.f32.mrf.mxu0
    %v2629 = vadd.f32 %v2615, %v2628
    %2630 = vdwg.mxu0
    %2631 = vmatpush.bf16.msra.mxu0 %v2274
    %2632 = vmatpush.bf16.msra.mxu0 %v2270
    %2633 = vmatpush.bf16.msra.mxu0 %v2266
    %2634 = vmatpush.bf16.msra.mxu0 %v2262
    %2635 = vmatpush.bf16.msra.mxu0 %v2258
    %2636 = vmatpush.bf16.msra.mxu0 %v2254
    %2637 = vmatpush.bf16.msra.mxu0 %v2250
    %2638 = vmatpush.bf16.msra.mxu0 %v2246
    %2639 = vmatmul.bf16.gmra.mxu0 %v1789
    %v2640 = vpop.f32.mrf.mxu0
    %v2641 = vadd.f32 %v2627, %v2640
    %v2642 = vpop.f32.mrf.mxu0
    %v2643 = vadd.f32 %v2629, %v2642
    %2644 = vdwg.mxu0
    %2645 = vmatpush.bf16.msra.mxu0 %v2306
    %2646 = vmatpush.bf16.msra.mxu0 %v2302
    %2647 = vmatpush.bf16.msra.mxu0 %v2298
    %2648 = vmatpush.bf16.msra.mxu0 %v2294
    %2649 = vmatpush.bf16.msra.mxu0 %v2290
    %2650 = vmatpush.bf16.msra.mxu0 %v2286
    %2651 = vmatpush.bf16.msra.mxu0 %v2282
    %2652 = vmatpush.bf16.msra.mxu0 %v2278
    %2653 = vmatmul.bf16.gmra.mxu0 %v1790
    %v2654 = vpop.f32.mrf.mxu0
    %v2655 = vadd.f32 %v2641, %v2654
    %v2656 = vpop.f32.mrf.mxu0
    %v2657 = vadd.f32 %v2643, %v2656
    %2658 = vdwg.mxu0
    %v2659 = vld [vmem:[#allocation10] sm:$0xf]
    %v2661 = vperm.slane %v2659, 0
    %v2662 = vperm.slane %v2659, 1
    %v2663 = vperm.slane %v2659, 2
    %v2664 = vperm.slane %v2659, 3
    %v2669 = vadd.f32 %v2487, %v2661
    %v2670 = vadd.f32 %v2543, %v2662
    %v2671 = vadd.f32 %v2599, %v2663
    %v2672 = vadd.f32 %v2655, %v2664
    %v2673 = vadd.f32 %v2489, %v2661
    %v2674 = vadd.f32 %v2545, %v2662
    %v2675 = vadd.f32 %v2601, %v2663
    %v2676 = vadd.f32 %v2657, %v2664
    %v2677 = vmax.f32 %v2669, 0.0
    %v2678 = vmax.f32 %v2670, 0.0
    %v2679 = vmax.f32 %v2671, 0.0
    %v2680 = vmax.f32 %v2672, 0.0
    %v2681 = vmax.f32 %v2673, 0.0
    %v2682 = vmax.f32 %v2674, 0.0
    %v2683 = vmax.f32 %v2675, 0.0
    %v2684 = vmax.f32 %v2676, 0.0
    %v2685 = vpack.c.bf16 %v2681, %v2677
    %v2686 = vpack.c.bf16 %v2682, %v2678
    %v2687 = vpack.c.bf16 %v2683, %v2679
    %v2688 = vpack.c.bf16 %v2684, %v2680
    %v2689 = vld [vmem:[#allocation11] sm:$0xf]
    %v2690 = vld [vmem:[#allocation11 + $0x4] sm:$0xf]
    %v2691 = vld [vmem:[#allocation11 + $0x8] sm:$0xf]
    %v2692 = vld [vmem:[#allocation11 + $0xc] sm:$0xf]
    %v2693 = vld [vmem:[#allocation11 + $0x10] sm:$0xf]
    %v2694 = vld [vmem:[#allocation11 + $0x14] sm:$0xf]
    %v2695 = vld [vmem:[#allocation11 + $0x18] sm:$0xf]
    %v2696 = vld [vmem:[#allocation11 + $0x1c] sm:$0xf]
    %v2697 = vld [vmem:[#allocation11 + $0x20] sm:$0xf]
    %v2698 = vld [vmem:[#allocation11 + $0x24] sm:$0xf]
    %v2699 = vld [vmem:[#allocation11 + $0x28] sm:$0xf]
    %v2700 = vld [vmem:[#allocation11 + $0x2c] sm:$0xf]
    %v2701 = vld [vmem:[#allocation11 + $0x30] sm:$0xf]
    %v2702 = vld [vmem:[#allocation11 + $0x34] sm:$0xf]
    %v2703 = vld [vmem:[#allocation11 + $0x38] sm:$0xf]
    %v2704 = vld [vmem:[#allocation11 + $0x3c] sm:$0xf]
    %v2705 = vld [vmem:[#allocation11 + $0x40] sm:$0xf]
    %v2706 = vld [vmem:[#allocation11 + $0x44] sm:$0xf]
    %v2707 = vld [vmem:[#allocation11 + $0x48] sm:$0xf]
    %v2708 = vld [vmem:[#allocation11 + $0x4c] sm:$0xf]
    %v2709 = vld [vmem:[#allocation11 + $0x50] sm:$0xf]
    %v2710 = vld [vmem:[#allocation11 + $0x54] sm:$0xf]
    %v2711 = vld [vmem:[#allocation11 + $0x58] sm:$0xf]
    %v2712 = vld [vmem:[#allocation11 + $0x5c] sm:$0xf]
    %v2713 = vld [vmem:[#allocation11 + $0x60] sm:$0xf]
    %v2714 = vld [vmem:[#allocation11 + $0x64] sm:$0xf]
    %v2715 = vld [vmem:[#allocation11 + $0x68] sm:$0xf]
    %v2716 = vld [vmem:[#allocation11 + $0x6c] sm:$0xf]
    %v2717 = vld [vmem:[#allocation11 + $0x70] sm:$0xf]
    %v2718 = vld [vmem:[#allocation11 + $0x74] sm:$0xf]
    %v2719 = vld [vmem:[#allocation11 + $0x78] sm:$0xf]
    %v2720 = vld [vmem:[#allocation11 + $0x7c] sm:$0xf]
    %v2721 = vld [vmem:[#allocation11 + $0x80] sm:$0xf]
    %v2722 = vld [vmem:[#allocation11 + $0x84] sm:$0xf]
    %v2723 = vld [vmem:[#allocation11 + $0x88] sm:$0xf]
    %v2724 = vld [vmem:[#allocation11 + $0x8c] sm:$0xf]
    %v2725 = vld [vmem:[#allocation11 + $0x90] sm:$0xf]
    %v2726 = vld [vmem:[#allocation11 + $0x94] sm:$0xf]
    %v2727 = vld [vmem:[#allocation11 + $0x98] sm:$0xf]
    %v2728 = vld [vmem:[#allocation11 + $0x9c] sm:$0xf]
    %v2729 = vld [vmem:[#allocation11 + $0xa0] sm:$0xf]
    %v2730 = vld [vmem:[#allocation11 + $0xa4] sm:$0xf]
    %v2731 = vld [vmem:[#allocation11 + $0xa8] sm:$0xf]
    %v2732 = vld [vmem:[#allocation11 + $0xac] sm:$0xf]
    %v2733 = vld [vmem:[#allocation11 + $0xb0] sm:$0xf]
    %v2734 = vld [vmem:[#allocation11 + $0xb4] sm:$0xf]
    %v2735 = vld [vmem:[#allocation11 + $0xb8] sm:$0xf]
    %v2736 = vld [vmem:[#allocation11 + $0xbc] sm:$0xf]
    %v2737 = vld [vmem:[#allocation11 + $0xc0] sm:$0xf]
    %v2738 = vld [vmem:[#allocation11 + $0xc4] sm:$0xf]
    %v2739 = vld [vmem:[#allocation11 + $0xc8] sm:$0xf]
    %v2740 = vld [vmem:[#allocation11 + $0xcc] sm:$0xf]
    %v2741 = vld [vmem:[#allocation11 + $0xd0] sm:$0xf]
    %v2742 = vld [vmem:[#allocation11 + $0xd4] sm:$0xf]
    %v2743 = vld [vmem:[#allocation11 + $0xd8] sm:$0xf]
    %v2744 = vld [vmem:[#allocation11 + $0xdc] sm:$0xf]
    %v2745 = vld [vmem:[#allocation11 + $0xe0] sm:$0xf]
    %v2746 = vld [vmem:[#allocation11 + $0xe4] sm:$0xf]
    %v2747 = vld [vmem:[#allocation11 + $0xe8] sm:$0xf]
    %v2748 = vld [vmem:[#allocation11 + $0xec] sm:$0xf]
    %v2749 = vld [vmem:[#allocation11 + $0xf0] sm:$0xf]
    %v2750 = vld [vmem:[#allocation11 + $0xf4] sm:$0xf]
    %v2751 = vld [vmem:[#allocation11 + $0xf8] sm:$0xf]
    %v2752 = vld [vmem:[#allocation11 + $0xfc] sm:$0xf]
    %v2753 = vld [vmem:[%s6] sm:$0x1]
    %v2755 = vperm.slane %v2753, 0
    %v2821 = vunpack.c.l.b16 %v2689
    %v2822 = vunpack.c.l.b16 %v2690
    %v2823 = vunpack.c.l.b16 %v2691
    %v2824 = vunpack.c.l.b16 %v2692
    %v2825 = vunpack.c.l.b16 %v2693
    %v2826 = vunpack.c.l.b16 %v2694
    %v2827 = vunpack.c.l.b16 %v2695
    %v2828 = vunpack.c.l.b16 %v2696
    %v2829 = vunpack.c.l.b16 %v2697
    %v2830 = vunpack.c.l.b16 %v2698
    %v2831 = vunpack.c.l.b16 %v2699
    %v2832 = vunpack.c.l.b16 %v2700
    %v2833 = vunpack.c.l.b16 %v2701
    %v2834 = vunpack.c.l.b16 %v2702
    %v2835 = vunpack.c.l.b16 %v2703
    %v2836 = vunpack.c.l.b16 %v2704
    %v2837 = vunpack.c.l.b16 %v2705
    %v2838 = vunpack.c.l.b16 %v2706
    %v2839 = vunpack.c.l.b16 %v2707
    %v2840 = vunpack.c.l.b16 %v2708
    %v2841 = vunpack.c.l.b16 %v2709
    %v2842 = vunpack.c.l.b16 %v2710
    %v2843 = vunpack.c.l.b16 %v2711
    %v2844 = vunpack.c.l.b16 %v2712
    %v2845 = vunpack.c.l.b16 %v2713
    %v2846 = vunpack.c.l.b16 %v2714
    %v2847 = vunpack.c.l.b16 %v2715
    %v2848 = vunpack.c.l.b16 %v2716
    %v2849 = vunpack.c.l.b16 %v2717
    %v2850 = vunpack.c.l.b16 %v2718
    %v2851 = vunpack.c.l.b16 %v2719
    %v2852 = vunpack.c.l.b16 %v2720
    %v2853 = vunpack.c.l.b16 %v2721
    %v2854 = vunpack.c.l.b16 %v2722
    %v2855 = vunpack.c.l.b16 %v2723
    %v2856 = vunpack.c.l.b16 %v2724
    %v2857 = vunpack.c.l.b16 %v2725
    %v2858 = vunpack.c.l.b16 %v2726
    %v2859 = vunpack.c.l.b16 %v2727
    %v2860 = vunpack.c.l.b16 %v2728
    %v2861 = vunpack.c.l.b16 %v2729
    %v2862 = vunpack.c.l.b16 %v2730
    %v2863 = vunpack.c.l.b16 %v2731
    %v2864 = vunpack.c.l.b16 %v2732
    %v2865 = vunpack.c.l.b16 %v2733
    %v2866 = vunpack.c.l.b16 %v2734
    %v2867 = vunpack.c.l.b16 %v2735
    %v2868 = vunpack.c.l.b16 %v2736
    %v2869 = vunpack.c.l.b16 %v2737
    %v2870 = vunpack.c.l.b16 %v2738
    %v2871 = vunpack.c.l.b16 %v2739
    %v2872 = vunpack.c.l.b16 %v2740
    %v2873 = vunpack.c.l.b16 %v2741
    %v2874 = vunpack.c.l.b16 %v2742
    %v2875 = vunpack.c.l.b16 %v2743
    %v2876 = vunpack.c.l.b16 %v2744
    %v2877 = vunpack.c.l.b16 %v2745
    %v2878 = vunpack.c.l.b16 %v2746
    %v2879 = vunpack.c.l.b16 %v2747
    %v2880 = vunpack.c.l.b16 %v2748
    %v2881 = vunpack.c.l.b16 %v2749
    %v2882 = vunpack.c.l.b16 %v2750
    %v2883 = vunpack.c.l.b16 %v2751
    %v2884 = vunpack.c.l.b16 %v2752
    %v2885 = vpack.c.b16 %v2822, %v2821
    %v2886 = vpack.c.b16 %v2824, %v2823
    %v2887 = vpack.c.b16 %v2826, %v2825
    %v2888 = vpack.c.b16 %v2828, %v2827
    %v2889 = vpack.c.b16 %v2830, %v2829
    %v2890 = vpack.c.b16 %v2832, %v2831
    %v2891 = vpack.c.b16 %v2834, %v2833
    %v2892 = vpack.c.b16 %v2836, %v2835
    %v2893 = vpack.c.b16 %v2838, %v2837
    %v2894 = vpack.c.b16 %v2840, %v2839
    %v2895 = vpack.c.b16 %v2842, %v2841
    %v2896 = vpack.c.b16 %v2844, %v2843
    %v2897 = vpack.c.b16 %v2846, %v2845
    %v2898 = vpack.c.b16 %v2848, %v2847
    %v2899 = vpack.c.b16 %v2850, %v2849
    %v2900 = vpack.c.b16 %v2852, %v2851
    %v2901 = vpack.c.b16 %v2854, %v2853
    %v2902 = vpack.c.b16 %v2856, %v2855
    %v2903 = vpack.c.b16 %v2858, %v2857
    %v2904 = vpack.c.b16 %v2860, %v2859
    %v2905 = vpack.c.b16 %v2862, %v2861
    %v2906 = vpack.c.b16 %v2864, %v2863
    %v2907 = vpack.c.b16 %v2866, %v2865
    %v2908 = vpack.c.b16 %v2868, %v2867
    %v2909 = vpack.c.b16 %v2870, %v2869
    %v2910 = vpack.c.b16 %v2872, %v2871
    %v2911 = vpack.c.b16 %v2874, %v2873
    %v2912 = vpack.c.b16 %v2876, %v2875
    %v2913 = vpack.c.b16 %v2878, %v2877
    %v2914 = vpack.c.b16 %v2880, %v2879
    %v2915 = vpack.c.b16 %v2882, %v2881
    %v2916 = vpack.c.b16 %v2884, %v2883
    %2949 = vmatpush.bf16.msra.mxu0 %v2892
    %2950 = vmatpush.bf16.msra.mxu0 %v2891
    %2951 = vmatpush.bf16.msra.mxu0 %v2890
    %2952 = vmatpush.bf16.msra.mxu0 %v2889
    %2953 = vmatpush.bf16.msra.mxu0 %v2888
    %2954 = vmatpush.bf16.msra.mxu0 %v2887
    %2955 = vmatpush.bf16.msra.mxu0 %v2886
    %2956 = vmatpush.bf16.msra.mxu0 %v2885
    %2957 = vmatmul.bf16.gmra.mxu0 %v2685
    %v2958 = vpop.f32.mrf.mxu0
    %v2959 = vadd.f32 %v2755, %v2958
    %v2960 = vpop.f32.mrf.mxu0
    %v2961 = vadd.f32 %v2755, %v2960
    %2962 = vdwg.mxu0
    %2963 = vmatpush.bf16.msra.mxu0 %v2900
    %2964 = vmatpush.bf16.msra.mxu0 %v2899
    %2965 = vmatpush.bf16.msra.mxu0 %v2898
    %2966 = vmatpush.bf16.msra.mxu0 %v2897
    %2967 = vmatpush.bf16.msra.mxu0 %v2896
    %2968 = vmatpush.bf16.msra.mxu0 %v2895
    %2969 = vmatpush.bf16.msra.mxu0 %v2894
    %2970 = vmatpush.bf16.msra.mxu0 %v2893
    %2971 = vmatmul.bf16.gmra.mxu0 %v2686
    %v2972 = vpop.f32.mrf.mxu0
    %v2973 = vadd.f32 %v2959, %v2972
    %v2974 = vpop.f32.mrf.mxu0
    %v2975 = vadd.f32 %v2961, %v2974
    %2976 = vdwg.mxu0
    %2977 = vmatpush.bf16.msra.mxu0 %v2908
    %2978 = vmatpush.bf16.msra.mxu0 %v2907
    %2979 = vmatpush.bf16.msra.mxu0 %v2906
    %2980 = vmatpush.bf16.msra.mxu0 %v2905
    %2981 = vmatpush.bf16.msra.mxu0 %v2904
    %2982 = vmatpush.bf16.msra.mxu0 %v2903
    %2983 = vmatpush.bf16.msra.mxu0 %v2902
    %2984 = vmatpush.bf16.msra.mxu0 %v2901
    %2985 = vmatmul.bf16.gmra.mxu0 %v2687
    %v2986 = vpop.f32.mrf.mxu0
    %v2987 = vadd.f32 %v2973, %v2986
    %v2988 = vpop.f32.mrf.mxu0
    %v2989 = vadd.f32 %v2975, %v2988
    %2990 = vdwg.mxu0
    %2991 = vmatpush.bf16.msra.mxu0 %v2916
    %2992 = vmatpush.bf16.msra.mxu0 %v2915
    %2993 = vmatpush.bf16.msra.mxu0 %v2914
    %2994 = vmatpush.bf16.msra.mxu0 %v2913
    %2995 = vmatpush.bf16.msra.mxu0 %v2912
    %2996 = vmatpush.bf16.msra.mxu0 %v2911
    %2997 = vmatpush.bf16.msra.mxu0 %v2910
    %2998 = vmatpush.bf16.msra.mxu0 %v2909
    %2999 = vmatmul.bf16.gmra.mxu0 %v2688
    %v3000 = vpop.f32.mrf.mxu0
    %v3001 = vadd.f32 %v2987, %v3000
    %v3002 = vpop.f32.mrf.mxu0
    %v3003 = vadd.f32 %v2989, %v3002
    %3004 = vdwg.mxu0
    %3005 = vst [vmem:[#allocation13] sm:$0xff] %v3001
    %3006 = vst [vmem:[#allocation13 + $0x8] sm:$0xff] %v3003
    // Predicated region
    $region54: #{tpu_custom_call.1} parent=1 // pred_check
      _
    $region55: #{tpu_custom_call.1} parent=1 // pred_check_branch
      %3008 = sbr.rel (0) target = $region57
    $region56: #{tpu_custom_call.1} parent=1 // pred_region
      %3010 = vsyncadd [#allocation4], 0
      %s3011 = sshll.u32 [#allocation13], 4
      %s3012 = int_to_ptr.vmem [resolvable:$true] %s3011
      %s3013 = sshll.u32 %s7, 4
      %s3014 = int_to_ptr.hbm [resolvable:$true] %s3013
      %3019 = dma.vmem_to_hbm [thread:$0]  %s3012, 256, %s3014, [#allocation4], 128, 128, 8
    $region57: #{tpu_custom_call.1} parent=1 // pred_fallthru
      _
    // Predicated region
    $region58: #{tpu_custom_call.1} parent=1 // pred_check
      _
    $region59: #{tpu_custom_call.1} parent=1 // pred_check_branch
      %3021 = sbr.rel (0) target = $region61
    $region60: #{tpu_custom_call.1} parent=1 // pred_region
      %3023 = dma.done [#allocation4], 256
    $region61: #{tpu_custom_call.1} parent=1 // pred_fallthru
      _
    %3024 = vsyncpa [#allocation3], 1
    %3025 = vsyncpa [#allocation6], 1
    %3026 = vsyncpa [#allocation9], 1
    %3027 = vsyncpa [#allocation12], 1
    %3028 = vsyncpa [#allocation4], 1

</llo_original>
